<compile_context>
chip_gen: v5e
topology: v5e:2x2
jax: 0.10.0
libtpu: 0.0.40
codegen_flags: <defaults>
</compile_context>

<pallas_src>
import jax
import jax.numpy as jnp
from jax.experimental import pallas as pl
from jax.experimental.pallas import tpu as pltpu


def decoder_kernel(
    # blocked inputs
    trg_ref,    # (BB, E)       target embedding for step t           [compute dtype]
    enc_ref,    # (BB, S, 2H)   encoder outputs (attention value)     [compute dtype]
    encf_ref,   # (BB, 2H)      final encoder state                   [compute dtype]
    bias_ref,   # (BB, S, 1)    additive softmax mask bias            [f32]
    # weights (full VMEM arrays, pre-transposed / pre-fused in the wrapper)
    wk_ref,     # (2H, H)   attention.key_layer.weight^T              [compute dtype]
    wh_ref,     # (H, 4H)   [Wq^T | Whh^T]           (applied to h)   [compute dtype]
    v_ref,      # (1, H)    attention.energy_layer.weight             [f32]
    bw_ref,     # (2H, H)   bridge.weight^T                           [compute dtype]
    bb_ref,     # (1, H)    bridge.bias                               [f32]
    wprev_ref,  # (E, 4H)   [Wih_x^T | Wpre_prev^T]  (applied to prev)[compute dtype]
    wctx_ref,   # (2H, 4H)  [Wih_c^T | Wpre_ctx^T]   (applied to ctx) [compute dtype]
    wph_ref,    # (H, H)    Wpre_out^T               (applied to h_new)
    bih_ref,    # (1, 3H)   rnn.bias_ih_l0                            [f32]
    bhh_ref,    # (1, 3H)   rnn.bias_hh_l0                            [f32]
    # blocked outputs
    out_ref,    # (BB, 2H)  [:, :H] = decoder state, [:, H:] = pre_output  [f32]
    hid_ref,    # (BB, H)   final hidden (written at the last step only)   [f32]
    # scratch (persists across grid steps)
    h_scr,      # (BB, H)     recurrent state, f32
    pk_scr,     # (BB, S, H)  proj_key, compute dtype
):
    BB, S, H2 = enc_ref.shape
    H = H2 // 2
    H3 = 3 * H
    cdt = wh_ref.dtype
    t = pl.program_id(1)

    # ---- per-batch-tile init (bridge, proj_key) ----
    @pl.when(t == 0)
    def _init():
        h0 = jnp.tanh(
            jnp.dot(encf_ref[...], bw_ref[...],
                    preferred_element_type=jnp.float32) + bb_ref[...])
        h_scr[...] = h0
        enc = enc_ref[...]
        if S % 8 == 0:
            # flat 2-D matmul (free sublane merge when S is 8-aligned)
            pk = jnp.dot(enc.reshape(BB * S, H2), wk_ref[...],
                         preferred_element_type=jnp.float32).reshape(BB, S, H)
        else:
            pk = jnp.einsum("bsk,kh->bsh", enc, wk_ref[...],
                            preferred_element_type=jnp.float32)
        pk_scr[...] = pk.astype(pk_scr.dtype)

    h = h_scr[...]                                            # (BB, H)  f32
    prev = trg_ref[...]                                       # (BB, E)  cdt

    # ---- fused h-matmul: [ query | gh(r,z,n) ] ----
    h_out = jnp.dot(h.astype(cdt), wh_ref[...],
                    preferred_element_type=jnp.float32)       # (BB, 4H)
    q = h_out[:, :H]                                          # (BB, H)
    gh = h_out[:, H:] + bhh_ref[...]                          # (BB, 3H)

    # ---- Bahdanau attention: scores = v^T tanh(Wq h + proj_key) ----
    e = jnp.tanh(q[:, None, :] + pk_scr[...].astype(jnp.float32))   # (BB,S,H) f32
    scores = jnp.sum(e * v_ref[...], axis=-1, keepdims=True) + bias_ref[...]  # (BB,S,1)
    smax = jnp.max(scores, axis=1, keepdims=True)                   # (BB,1,1)
    p = jnp.exp(scores - smax)
    alphas = p / jnp.sum(p, axis=1, keepdims=True)                  # (BB,S,1) exact
    # context: VPU multiply + sublane reduce on the XLU (frees the MXU slot)
    ctx = jnp.sum(alphas * enc_ref[...], axis=1)                    # (BB,2H) f32

    # ---- fused prev / ctx matmuls: [ gi(r,z,n) | pre contribution ] ----
    prev_out = jnp.dot(prev, wprev_ref[...],
                       preferred_element_type=jnp.float32)          # (BB, 4H)
    ctx_out = jnp.dot(ctx.astype(cdt), wctx_ref[...],
                      preferred_element_type=jnp.float32)           # (BB, 4H)

    # ---- GRU cell (PyTorch gate order r, z, n) ----
    gi = prev_out[:, :H3] + ctx_out[:, :H3] + bih_ref[...]          # (BB, 3H)
    r = jax.nn.sigmoid(gi[:, :H] + gh[:, :H])
    z = jax.nn.sigmoid(gi[:, H:2 * H] + gh[:, H:2 * H])
    n = jnp.tanh(gi[:, 2 * H:] + r * gh[:, 2 * H:])
    h_new = (1.0 - z) * n + z * h                                   # (BB, H) f32

    # ---- pre_output = Wpre @ [prev_embed, output, context] (dropout = id) ----
    pre = (prev_out[:, H3:] + ctx_out[:, H3:]
           + jnp.dot(h_new.astype(cdt), wph_ref[...],
                     preferred_element_type=jnp.float32))           # (BB, H)

    h_scr[...] = h_new
    # single lane-dense store of the fused [state | pre_output] block
    out_ref[...] = jnp.concatenate([h_new, pre], axis=-1)

    @pl.when(t == pl.num_programs(1) - 1)
    def _flush():
        hid_ref[...] = h_new


def _vmem_limit_bytes():
    cap = 64 * 1024 * 1024
    try:
        info = pltpu.get_tpu_info()
        cap = int(getattr(info, "vmem_capacity_bytes", cap))
    except Exception:
        pass
    return int(cap * 3 // 4)      # leave headroom below the physical limit


def _choose_batch_block(B):
    """Pick BB: multiple of 8 that divides B, gives nb >= 2 (so the 'parallel'
    batch axis can shard across v7x's two TensorCores) and roughly fills the
    MXU M dimension."""
    if B % 16 != 0:
        return B                      # tiny / odd batch: single full tile
    target = min(256, B // 2)
    bb = (target // 8) * 8
    while bb > 8 and B % bb != 0:
        bb -= 8
    return bb if bb >= 8 and B % bb == 0 else B


def decoder_forward(trg_embed, encoder_hidden, encoder_final, src_mask, params,
                    *, batch_block=None, compute_dtype=jnp.bfloat16):
    B, T, E = trg_embed.shape
    _, S, H2 = encoder_hidden.shape
    H = H2 // 2
    cdt = compute_dtype

    BB = _choose_batch_block(B) if batch_block is None else batch_block
    assert B % BB == 0 and (BB == B or BB % 8 == 0), \
        "batch_block must divide B and be a multiple of 8 (or equal B)"
    nb = B // BB

    # ---- wrapper-side layout plumbing (keeps the kernel transpose/concat-free) ----
    trg_t = jnp.transpose(trg_embed, (1, 0, 2)).astype(cdt)    # (T, B, E) time-major
    enc = encoder_hidden.astype(cdt)                           # (B, S, 2H)
    encf2 = encoder_final[0].astype(cdt)                       # (B, 2H)
    mask_bias = jnp.where(src_mask[:, 0, :, None] == 0.0,
                          -1e30, 0.0).astype(jnp.float32)      # (B, S, 1)

    wih = params["w_ih"]        # (3H, E+2H)  cols = [prev(E), ctx(2H)]
    wpre = params["w_pre"]      # (H, E+3H)   cols = [prev(E), out(H), ctx(2H)]
    weights = (
        params["wk"].T.astype(cdt),                                         # (2H, H)
        jnp.concatenate([params["wq"].T, params["w_hh"].T], 1).astype(cdt), # (H, 4H)
        params["v"].astype(jnp.float32),                                    # (1, H)
        params["bridge_w"].T.astype(cdt),                                   # (2H, H)
        params["bridge_b"].astype(jnp.float32),                             # (1, H)
        jnp.concatenate([wih[:, :E].T, wpre[:, :E].T], 1).astype(cdt),      # (E, 4H)
        jnp.concatenate([wih[:, E:].T, wpre[:, E + H:].T], 1).astype(cdt),  # (2H, 4H)
        wpre[:, E:E + H].T.astype(cdt),                                     # (H, H)
        params["b_ih"].astype(jnp.float32),                                 # (1, 3H)
        params["b_hh"].astype(jnp.float32),                                 # (1, 3H)
    )

    vmem_full = pl.BlockSpec(memory_space=pltpu.MemorySpace.VMEM)
    in_specs = [
        pl.BlockSpec((None, BB, E), lambda b, t: (t, b, 0)),       # trg (time-major)
        pl.BlockSpec((BB, S, 2 * H), lambda b, t: (b, 0, 0)),      # enc (resident per tile)
        pl.BlockSpec((BB, 2 * H), lambda b, t: (b, 0)),            # encoder_final
        pl.BlockSpec((BB, S, 1), lambda b, t: (b, 0, 0)),          # softmax mask bias
    ] + [vmem_full] * len(weights)

    out_specs = [
        pl.BlockSpec((None, BB, 2 * H), lambda b, t: (t, b, 0)),   # fused [state|pre]
        pl.BlockSpec((BB, H), lambda b, t: (b, 0)),                # final hidden
    ]
    out_shape = (
        jax.ShapeDtypeStruct((T, B, 2 * H), jnp.float32),
        jax.ShapeDtypeStruct((B, H), jnp.float32),
    )

    grid_spec = pltpu.PrefetchScalarGridSpec(
        num_scalar_prefetch=0,
        grid=(nb, T),
        in_specs=in_specs,
        out_specs=out_specs,
        scratch_shapes=[
            pltpu.VMEM((BB, H), jnp.float32),      # hidden state h (f32)
            pltpu.VMEM((BB, S, H), cdt),           # proj_key (compute dtype)
        ],
    )

    comb, hid = pl.pallas_call(
        decoder_kernel,
        out_shape=out_shape,
        grid_spec=grid_spec,
        compiler_params=pltpu.CompilerParams(
            dimension_semantics=("parallel", "arbitrary"),
            vmem_limit_bytes=_vmem_limit_bytes(),
        ),
    )(trg_t, enc, encf2, mask_bias, *weights)

    decoder_states = jnp.transpose(comb[:, :, :H], (1, 0, 2))   # (B, T, H)
    pre_output = jnp.transpose(comb[:, :, H:], (1, 0, 2))       # (B, T, H)
    hidden = hid[None]                                          # (1, B, H)
    return decoder_states, hidden, pre_output


# ----------------------- plain-JAX reference (for verification) -----------------------
def decoder_ref(trg_embed, encoder_hidden, encoder_final, src_mask, params):
    B, T, E = trg_embed.shape
    _, S, H2 = encoder_hidden.shape
    H = H2 // 2
    mask = src_mask[:, 0, :]

    h = jnp.tanh(encoder_final[0] @ params["bridge_w"].T + params["bridge_b"][0])
    proj_key = jnp.einsum("bsk,hk->bsh", encoder_hidden, params["wk"])

    states, preouts = [], []
    for t in range(T):
        prev = trg_embed[:, t, :]
        q = h @ params["wq"].T
        e = jnp.tanh(q[:, None, :] + proj_key)
        scores = jnp.einsum("bsh,h->bs", e, params["v"][0])
        scores = jnp.where(mask == 0.0, -jnp.inf, scores)
        alphas = jax.nn.softmax(scores, axis=-1)
        context = jnp.einsum("bs,bsd->bd", alphas, encoder_hidden)

        x = jnp.concatenate([prev, context], axis=-1)
        gi = x @ params["w_ih"].T + params["b_ih"][0]
        gh = h @ params["w_hh"].T + params["b_hh"][0]
        r = jax.nn.sigmoid(gi[:, :H] + gh[:, :H])
        z = jax.nn.sigmoid(gi[:, H:2 * H] + gh[:, H:2 * H])
        n = jnp.tanh(gi[:, 2 * H:] + r * gh[:, 2 * H:])
        h = (1.0 - z) * n + z * h

        pre_in = jnp.concatenate([prev, h, context], axis=-1)
        preouts.append(pre_in @ params["w_pre"].T)
        states.append(h)

    return (jnp.stack(states, axis=1), h[None], jnp.stack(preouts, axis=1))


def make_params(key, E, H):
    ks = jax.random.split(key, 10)
    s = 0.1
    return {
        "wk": s * jax.random.normal(ks[0], (H, 2 * H), jnp.float32),
        "wq": s * jax.random.normal(ks[1], (H, H), jnp.float32),
        "v": s * jax.random.normal(ks[2], (1, H), jnp.float32),
        "bridge_w": s * jax.random.normal(ks[3], (H, 2 * H), jnp.float32),
        "bridge_b": s * jax.random.normal(ks[4], (1, H), jnp.float32),
        "w_ih": s * jax.random.normal(ks[5], (3 * H, E + 2 * H), jnp.float32),
        "w_hh": s * jax.random.normal(ks[6], (3 * H, H), jnp.float32),
        "b_ih": s * jax.random.normal(ks[7], (1, 3 * H), jnp.float32),
        "b_hh": s * jax.random.normal(ks[8], (1, 3 * H), jnp.float32),
        "w_pre": s * jax.random.normal(ks[9], (H, E + 3 * H), jnp.float32),
    }


if __name__ == "__main__":
    B, S, T, E, H = 2, 8, 8, 32, 32

    key = jax.random.PRNGKey(0)
    k_emb, k_enc, k_fin, k_par = jax.random.split(key, 4)

    trg_embed = jax.random.normal(k_emb, (B, T, E), jnp.float32)
    encoder_hidden = jax.random.normal(k_enc, (B, S, 2 * H), jnp.float32)
    encoder_final = jax.random.normal(k_fin, (1, B, 2 * H), jnp.float32)
    # src_mask: batch 0 fully valid, batch 1 has last 3 positions masked
    src_mask = jnp.ones((B, 1, S), jnp.float32)
    src_mask = src_mask.at[1, 0, S - 3:].set(0.0)

    params = make_params(k_par, E, H)

    r_states, r_hidden, r_preout = decoder_ref(
        trg_embed, encoder_hidden, encoder_final, src_mask, params)

    # ---- f32 MXU-operand path: tight check against the XLA reference ----
    states, hidden, preout = jax.block_until_ready(
        decoder_forward(trg_embed, encoder_hidden, encoder_final, src_mask,
                        params, compute_dtype=jnp.float32))
    assert states.shape == (B, T, H) and hidden.shape == (1, B, H) \
        and preout.shape == (B, T, H)
    assert jnp.allclose(states, r_states, rtol=5e-3, atol=5e-3)
    assert jnp.allclose(hidden, r_hidden, rtol=5e-3, atol=5e-3)
    assert jnp.allclose(preout, r_preout, rtol=5e-3, atol=5e-3)

    # ---- bf16 MXU-operand path (f32 accumulation): performance configuration ----
    # Looser tolerance: bf16 operand rounding compounds over T recurrent steps.
    states_bf, hidden_bf, preout_bf = jax.block_until_ready(
        decoder_forward(trg_embed, encoder_hidden, encoder_final, src_mask,
                        params, compute_dtype=jnp.bfloat16))
    assert jnp.allclose(states_bf, r_states, rtol=5e-2, atol=5e-2)
    assert jnp.allclose(hidden_bf, r_hidden, rtol=5e-2, atol=5e-2)
    assert jnp.allclose(preout_bf, r_preout, rtol=5e-2, atol=5e-2)

    print("KERNEL_OK")
</pallas_src>

<mosaic_0001>
module attributes {stable_mosaic.version = 11 : i64} {
  func.func @decoder_kernel(%arg0: i32, %arg1: i32, %arg2: memref<1x2x32xf32, #tpu.memory_space<vmem>>, %arg3: memref<2x8x64xf32, #tpu.memory_space<vmem>>, %arg4: memref<2x64xf32, #tpu.memory_space<vmem>>, %arg5: memref<2x8x1xf32, #tpu.memory_space<vmem>>, %arg6: memref<64x32xf32, #tpu.memory_space<vmem>>, %arg7: memref<32x128xf32, #tpu.memory_space<vmem>>, %arg8: memref<1x32xf32, #tpu.memory_space<vmem>>, %arg9: memref<64x32xf32, #tpu.memory_space<vmem>>, %arg10: memref<1x32xf32, #tpu.memory_space<vmem>>, %arg11: memref<32x128xf32, #tpu.memory_space<vmem>>, %arg12: memref<64x128xf32, #tpu.memory_space<vmem>>, %arg13: memref<32x32xf32, #tpu.memory_space<vmem>>, %arg14: memref<1x96xf32, #tpu.memory_space<vmem>>, %arg15: memref<1x96xf32, #tpu.memory_space<vmem>>, %arg16: memref<1x2x64xf32, #tpu.memory_space<vmem>>, %arg17: memref<2x32xf32, #tpu.memory_space<vmem>>, %arg18: memref<2x32xf32, #tpu.memory_space<vmem>>, %arg19: memref<2x8x32xf32, #tpu.memory_space<vmem>>) attributes {dimension_semantics = [#tpu.dimension_semantics<parallel>, #tpu.dimension_semantics<arbitrary>], iteration_bounds = array<i64: 1, 8>, scalar_prefetch = 0 : i64, scratch_operands = 2 : i64, tpu.core_type = #tpu.core_type<tc>, window_params = [{transform_indices = @transform_0, window_bounds = array<i64: 1, 2, 32>}, {transform_indices = @transform_1, window_bounds = array<i64: 2, 8, 64>}, {transform_indices = @transform_2, window_bounds = array<i64: 2, 64>}, {transform_indices = @transform_3, window_bounds = array<i64: 2, 8, 1>}, {pipeline_mode = #tpu.pipeline_mode<synchronous>, transform_indices = @transform_4, window_bounds = array<i64: 64, 32>}, {pipeline_mode = #tpu.pipeline_mode<synchronous>, transform_indices = @transform_5, window_bounds = array<i64: 32, 128>}, {pipeline_mode = #tpu.pipeline_mode<synchronous>, transform_indices = @transform_6, window_bounds = array<i64: 1, 32>}, {pipeline_mode = #tpu.pipeline_mode<synchronous>, transform_indices = @transform_7, window_bounds = array<i64: 64, 32>}, {pipeline_mode = #tpu.pipeline_mode<synchronous>, transform_indices = @transform_8, window_bounds = array<i64: 1, 32>}, {pipeline_mode = #tpu.pipeline_mode<synchronous>, transform_indices = @transform_9, window_bounds = array<i64: 32, 128>}, {pipeline_mode = #tpu.pipeline_mode<synchronous>, transform_indices = @transform_10, window_bounds = array<i64: 64, 128>}, {pipeline_mode = #tpu.pipeline_mode<synchronous>, transform_indices = @transform_11, window_bounds = array<i64: 32, 32>}, {pipeline_mode = #tpu.pipeline_mode<synchronous>, transform_indices = @transform_12, window_bounds = array<i64: 1, 96>}, {pipeline_mode = #tpu.pipeline_mode<synchronous>, transform_indices = @transform_13, window_bounds = array<i64: 1, 96>}, {transform_indices = @transform_14, window_bounds = array<i64: 1, 2, 64>}, {transform_indices = @transform_15, window_bounds = array<i64: 2, 32>}]} {
    %c0_i32 = arith.constant 0 : i32
    %0 = arith.cmpi eq, %arg1, %c0_i32 : i32
    %1 = arith.extui %0 : i1 to i32
    %c0_i32_0 = arith.constant 0 : i32
    %2 = arith.cmpi ne, %1, %c0_i32_0 : i32
    scf.if %2 {
      %c0_44 = arith.constant 0 : index
      %c0_45 = arith.constant 0 : index
      %89 = vector.load %arg4[%c0_44, %c0_45] : memref<2x64xf32, #tpu.memory_space<vmem>>, vector<2x64xf32>
      %c0_46 = arith.constant 0 : index
      %c0_47 = arith.constant 0 : index
      %90 = vector.load %arg9[%c0_46, %c0_47] : memref<64x32xf32, #tpu.memory_space<vmem>>, vector<64x32xf32>
      %cst_48 = arith.constant dense<0.000000e+00> : vector<2x32xf32>
      %91 = tpu.matmul %89, %90, %cst_48 {dimension_numbers = #tpu.dot_dimension_numbers<[1], [0], [0], [1], [0, 0, 1, 1], [], []>} : vector<2x64xf32>, vector<64x32xf32>, vector<2x32xf32> -> vector<2x32xf32>
      %c0_49 = arith.constant 0 : index
      %c0_50 = arith.constant 0 : index
      %92 = vector.load %arg10[%c0_49, %c0_50] : memref<1x32xf32, #tpu.memory_space<vmem>>, vector<1x32xf32>
      %93 = vector.broadcast %92 : vector<1x32xf32> to vector<2x32xf32>
      %94 = arith.addf %91, %93 : vector<2x32xf32>
      %95 = math.tanh %94 : vector<2x32xf32>
      %c0_51 = arith.constant 0 : index
      %c0_52 = arith.constant 0 : index
      %96 = vector.load %arg18[%c0_51, %c0_52] : memref<2x32xf32, #tpu.memory_space<vmem>>, vector<2x32xf32>
      tpu.vector_store %arg18[%c0_51, %c0_52], %95 {strides = array<i32>} : memref<2x32xf32, #tpu.memory_space<vmem>>, vector<2x32xf32>,
      %c0_53 = arith.constant 0 : index
      %c0_54 = arith.constant 0 : index
      %c0_55 = arith.constant 0 : index
      %97 = vector.load %arg3[%c0_53, %c0_54, %c0_55] : memref<2x8x64xf32, #tpu.memory_space<vmem>>, vector<2x8x64xf32>
      %98 = vector.shape_cast %97 : vector<2x8x64xf32> to vector<16x64xf32>
      %c0_56 = arith.constant 0 : index
      %c0_57 = arith.constant 0 : index
      %99 = vector.load %arg6[%c0_56, %c0_57] : memref<64x32xf32, #tpu.memory_space<vmem>>, vector<64x32xf32>
      %cst_58 = arith.constant dense<0.000000e+00> : vector<16x32xf32>
      %100 = tpu.matmul %98, %99, %cst_58 {dimension_numbers = #tpu.dot_dimension_numbers<[1], [0], [0], [1], [0, 0, 1, 1], [], []>} : vector<16x64xf32>, vector<64x32xf32>, vector<16x32xf32> -> vector<16x32xf32>
      %101 = vector.shape_cast %100 : vector<16x32xf32> to vector<2x8x32xf32>
      %c0_59 = arith.constant 0 : index
      %c0_60 = arith.constant 0 : index
      %c0_61 = arith.constant 0 : index
      %102 = vector.load %arg19[%c0_59, %c0_60, %c0_61] : memref<2x8x32xf32, #tpu.memory_space<vmem>>, vector<2x8x32xf32>
      tpu.vector_store %arg19[%c0_59, %c0_60, %c0_61], %101 {strides = array<i32>} : memref<2x8x32xf32, #tpu.memory_space<vmem>>, vector<2x8x32xf32>,
    } else {
    }
    %c0 = arith.constant 0 : index
    %c0_1 = arith.constant 0 : index
    %3 = vector.load %arg18[%c0, %c0_1] : memref<2x32xf32, #tpu.memory_space<vmem>>, vector<2x32xf32>
    %c0_2 = arith.constant 0 : index
    %c0_3 = arith.constant 0 : index
    %c0_4 = arith.constant 0 : index
    %4 = vector.load %arg2[%c0_2, %c0_3, %c0_4] : memref<1x2x32xf32, #tpu.memory_space<vmem>>, vector<1x2x32xf32>
    %5 = vector.shape_cast %4 : vector<1x2x32xf32> to vector<2x32xf32>
    %c0_5 = arith.constant 0 : index
    %c0_6 = arith.constant 0 : index
    %6 = vector.load %arg7[%c0_5, %c0_6] : memref<32x128xf32, #tpu.memory_space<vmem>>, vector<32x128xf32>
    %cst = arith.constant dense<0.000000e+00> : vector<2x128xf32>
    %7 = tpu.matmul %3, %6, %cst {dimension_numbers = #tpu.dot_dimension_numbers<[1], [0], [0], [1], [0, 0, 1, 1], [], []>} : vector<2x32xf32>, vector<32x128xf32>, vector<2x128xf32> -> vector<2x128xf32>
    %8 = vector.extract_strided_slice %7 {offsets = [0, 0], sizes = [2, 32], strides = [1, 1]} : vector<2x128xf32> to vector<2x32xf32>
    %9 = vector.extract_strided_slice %7 {offsets = [0, 32], sizes = [2, 96], strides = [1, 1]} : vector<2x128xf32> to vector<2x96xf32>
    %c0_7 = arith.constant 0 : index
    %c0_8 = arith.constant 0 : index
    %10 = vector.load %arg15[%c0_7, %c0_8] : memref<1x96xf32, #tpu.memory_space<vmem>>, vector<1x96xf32>
    %11 = vector.broadcast %10 : vector<1x96xf32> to vector<2x96xf32>
    %12 = arith.addf %9, %11 : vector<2x96xf32>
    %13 = vector.shape_cast %8 : vector<2x32xf32> to vector<2x1x32xf32>
    %c0_9 = arith.constant 0 : index
    %c0_10 = arith.constant 0 : index
    %c0_11 = arith.constant 0 : index
    %14 = vector.load %arg19[%c0_9, %c0_10, %c0_11] : memref<2x8x32xf32, #tpu.memory_space<vmem>>, vector<2x8x32xf32>
    %15 = vector.broadcast %13 : vector<2x1x32xf32> to vector<2x8x32xf32>
    %16 = arith.addf %15, %14 : vector<2x8x32xf32>
    %17 = math.tanh %16 : vector<2x8x32xf32>
    %c0_12 = arith.constant 0 : index
    %c0_13 = arith.constant 0 : index
    %18 = vector.load %arg8[%c0_12, %c0_13] : memref<1x32xf32, #tpu.memory_space<vmem>>, vector<1x32xf32>
    %19 = vector.shape_cast %18 : vector<1x32xf32> to vector<1x1x32xf32>
    %20 = vector.broadcast %19 : vector<1x1x32xf32> to vector<2x8x32xf32>
    %21 = arith.mulf %17, %20 : vector<2x8x32xf32>
    %cst_14 = arith.constant dense<0.000000e+00> : vector<2x8xf32>
    %22 = vector.multi_reduction <add>, %21, %cst_14 [2] : vector<2x8x32xf32> to vector<2x8xf32>
    %23 = vector.shape_cast %22 : vector<2x8xf32> to vector<2x8x1xf32>
    %c0_15 = arith.constant 0 : index
    %c0_16 = arith.constant 0 : index
    %c0_17 = arith.constant 0 : index
    %24 = vector.load %arg5[%c0_15, %c0_16, %c0_17] : memref<2x8x1xf32, #tpu.memory_space<vmem>>, vector<2x8x1xf32>
    %25 = arith.addf %23, %24 : vector<2x8x1xf32>
    %cst_18 = arith.constant dense<0xFF800000> : vector<2x1xf32>
    %26 = vector.multi_reduction <maximumf>, %25, %cst_18 [1] : vector<2x8x1xf32> to vector<2x1xf32>
    %27 = vector.shape_cast %26 : vector<2x1xf32> to vector<2x1x1xf32>
    %28 = vector.broadcast %27 : vector<2x1x1xf32> to vector<2x8x1xf32>
    %29 = arith.subf %25, %28 : vector<2x8x1xf32>
    %30 = math.exp %29 : vector<2x8x1xf32>
    %cst_19 = arith.constant dense<0.000000e+00> : vector<2x1xf32>
    %31 = vector.multi_reduction <add>, %30, %cst_19 [1] : vector<2x8x1xf32> to vector<2x1xf32>
    %32 = vector.shape_cast %31 : vector<2x1xf32> to vector<2x1x1xf32>
    %33 = vector.broadcast %32 : vector<2x1x1xf32> to vector<2x8x1xf32>
    %34 = arith.divf %30, %33 : vector<2x8x1xf32>
    %c0_20 = arith.constant 0 : index
    %c0_21 = arith.constant 0 : index
    %c0_22 = arith.constant 0 : index
    %35 = vector.load %arg3[%c0_20, %c0_21, %c0_22] : memref<2x8x64xf32, #tpu.memory_space<vmem>>, vector<2x8x64xf32>
    %36 = vector.broadcast %34 : vector<2x8x1xf32> to vector<2x8x64xf32>
    %37 = arith.mulf %36, %35 : vector<2x8x64xf32>
    %cst_23 = arith.constant dense<0.000000e+00> : vector<2x64xf32>
    %38 = vector.multi_reduction <add>, %37, %cst_23 [1] : vector<2x8x64xf32> to vector<2x64xf32>
    %c0_24 = arith.constant 0 : index
    %c0_25 = arith.constant 0 : index
    %39 = vector.load %arg11[%c0_24, %c0_25] : memref<32x128xf32, #tpu.memory_space<vmem>>, vector<32x128xf32>
    %cst_26 = arith.constant dense<0.000000e+00> : vector<2x128xf32>
    %40 = tpu.matmul %5, %39, %cst_26 {dimension_numbers = #tpu.dot_dimension_numbers<[1], [0], [0], [1], [0, 0, 1, 1], [], []>} : vector<2x32xf32>, vector<32x128xf32>, vector<2x128xf32> -> vector<2x128xf32>
    %c0_27 = arith.constant 0 : index
    %c0_28 = arith.constant 0 : index
    %41 = vector.load %arg12[%c0_27, %c0_28] : memref<64x128xf32, #tpu.memory_space<vmem>>, vector<64x128xf32>
    %cst_29 = arith.constant dense<0.000000e+00> : vector<2x128xf32>
    %42 = tpu.matmul %38, %41, %cst_29 {dimension_numbers = #tpu.dot_dimension_numbers<[1], [0], [0], [1], [0, 0, 1, 1], [], []>} : vector<2x64xf32>, vector<64x128xf32>, vector<2x128xf32> -> vector<2x128xf32>
    %43 = vector.extract_strided_slice %40 {offsets = [0, 0], sizes = [2, 96], strides = [1, 1]} : vector<2x128xf32> to vector<2x96xf32>
    %44 = vector.extract_strided_slice %42 {offsets = [0, 0], sizes = [2, 96], strides = [1, 1]} : vector<2x128xf32> to vector<2x96xf32>
    %45 = arith.addf %43, %44 : vector<2x96xf32>
    %c0_30 = arith.constant 0 : index
    %c0_31 = arith.constant 0 : index
    %46 = vector.load %arg14[%c0_30, %c0_31] : memref<1x96xf32, #tpu.memory_space<vmem>>, vector<1x96xf32>
    %47 = vector.broadcast %46 : vector<1x96xf32> to vector<2x96xf32>
    %48 = arith.addf %45, %47 : vector<2x96xf32>
    %49 = vector.extract_strided_slice %48 {offsets = [0, 0], sizes = [2, 32], strides = [1, 1]} : vector<2x96xf32> to vector<2x32xf32>
    %50 = vector.extract_strided_slice %12 {offsets = [0, 0], sizes = [2, 32], strides = [1, 1]} : vector<2x96xf32> to vector<2x32xf32>
    %51 = arith.addf %49, %50 : vector<2x32xf32>
    %52 = arith.negf %51 : vector<2x32xf32>
    %53 = math.exp %52 : vector<2x32xf32>
    %cst_32 = arith.constant 1.000000e+00 : f32
    %54 = vector.broadcast %cst_32 : f32 to vector<2x32xf32>
    %55 = arith.addf %54, %53 : vector<2x32xf32>
    %56 = arith.divf %54, %55 : vector<2x32xf32>
    %57 = vector.extract_strided_slice %48 {offsets = [0, 32], sizes = [2, 32], strides = [1, 1]} : vector<2x96xf32> to vector<2x32xf32>
    %58 = vector.extract_strided_slice %12 {offsets = [0, 32], sizes = [2, 32], strides = [1, 1]} : vector<2x96xf32> to vector<2x32xf32>
    %59 = arith.addf %57, %58 : vector<2x32xf32>
    %60 = arith.negf %59 : vector<2x32xf32>
    %61 = math.exp %60 : vector<2x32xf32>
    %cst_33 = arith.constant 1.000000e+00 : f32
    %62 = vector.broadcast %cst_33 : f32 to vector<2x32xf32>
    %63 = arith.addf %62, %61 : vector<2x32xf32>
    %64 = arith.divf %62, %63 : vector<2x32xf32>
    %65 = vector.extract_strided_slice %48 {offsets = [0, 64], sizes = [2, 32], strides = [1, 1]} : vector<2x96xf32> to vector<2x32xf32>
    %66 = vector.extract_strided_slice %12 {offsets = [0, 64], sizes = [2, 32], strides = [1, 1]} : vector<2x96xf32> to vector<2x32xf32>
    %67 = arith.mulf %56, %66 : vector<2x32xf32>
    %68 = arith.addf %65, %67 : vector<2x32xf32>
    %69 = math.tanh %68 : vector<2x32xf32>
    %cst_34 = arith.constant 1.000000e+00 : f32
    %70 = vector.broadcast %cst_34 : f32 to vector<2x32xf32>
    %71 = arith.subf %70, %64 : vector<2x32xf32>
    %72 = arith.mulf %71, %69 : vector<2x32xf32>
    %73 = arith.mulf %64, %3 : vector<2x32xf32>
    %74 = arith.addf %72, %73 : vector<2x32xf32>
    %75 = vector.extract_strided_slice %40 {offsets = [0, 96], sizes = [2, 32], strides = [1, 1]} : vector<2x128xf32> to vector<2x32xf32>
    %76 = vector.extract_strided_slice %42 {offsets = [0, 96], sizes = [2, 32], strides = [1, 1]} : vector<2x128xf32> to vector<2x32xf32>
    %77 = arith.addf %75, %76 : vector<2x32xf32>
    %c0_35 = arith.constant 0 : index
    %c0_36 = arith.constant 0 : index
    %78 = vector.load %arg13[%c0_35, %c0_36] : memref<32x32xf32, #tpu.memory_space<vmem>>, vector<32x32xf32>
    %cst_37 = arith.constant dense<0.000000e+00> : vector<2x32xf32>
    %79 = tpu.matmul %74, %78, %cst_37 {dimension_numbers = #tpu.dot_dimension_numbers<[1], [0], [0], [1], [0, 0, 1, 1], [], []>} : vector<2x32xf32>, vector<32x32xf32>, vector<2x32xf32> -> vector<2x32xf32>
    %80 = arith.addf %77, %79 : vector<2x32xf32>
    %c0_38 = arith.constant 0 : index
    %c0_39 = arith.constant 0 : index
    %81 = vector.load %arg18[%c0_38, %c0_39] : memref<2x32xf32, #tpu.memory_space<vmem>>, vector<2x32xf32>
    tpu.vector_store %arg18[%c0_38, %c0_39], %74 {strides = array<i32>} : memref<2x32xf32, #tpu.memory_space<vmem>>, vector<2x32xf32>,
    %82 = tpu.concatenate %74, %80 in 1 : vector<2x32xf32>, vector<2x32xf32> -> vector<2x64xf32>
    %c0_40 = arith.constant 0 : index
    %c0_41 = arith.constant 0 : index
    %c0_42 = arith.constant 0 : index
    %83 = vector.load %arg16[%c0_40, %c0_41, %c0_42] : memref<1x2x64xf32, #tpu.memory_space<vmem>>, vector<1x2x64xf32>
    %84 = vector.shape_cast %83 : vector<1x2x64xf32> to vector<2x64xf32>
    %85 = vector.shape_cast %82 : vector<2x64xf32> to vector<1x2x64xf32>
    tpu.vector_store %arg16[%c0_40, %c0_41, %c0_42], %85 {strides = array<i32>} : memref<1x2x64xf32, #tpu.memory_space<vmem>>, vector<1x2x64xf32>,
    %c7_i32 = arith.constant 7 : i32
    %86 = arith.cmpi eq, %arg1, %c7_i32 : i32
    %87 = arith.extui %86 : i1 to i32
    %c0_i32_43 = arith.constant 0 : i32
    %88 = arith.cmpi ne, %87, %c0_i32_43 : i32
    scf.if %88 {
      %c0_44 = arith.constant 0 : index
      %c0_45 = arith.constant 0 : index
      %89 = vector.load %arg17[%c0_44, %c0_45] : memref<2x32xf32, #tpu.memory_space<vmem>>, vector<2x32xf32>
      tpu.vector_store %arg17[%c0_44, %c0_45], %74 {strides = array<i32>} : memref<2x32xf32, #tpu.memory_space<vmem>>, vector<2x32xf32>,
    } else {
    }
    return
  }
  func.func @transform_0(%arg0: i32, %arg1: i32) -> (i32, i32, i32) {
    %c0_i32 = arith.constant 0 : i32
    %c0_i32_0 = arith.constant 0 : i32
    return %arg1, %arg0, %c0_i32 : i32, i32, i32
  }
  func.func @transform_1(%arg0: i32, %arg1: i32) -> (i32, i32, i32) {
    %c0_i32 = arith.constant 0 : i32
    %c0_i32_0 = arith.constant 0 : i32
    %c0_i32_1 = arith.constant 0 : i32
    return %arg0, %c0_i32, %c0_i32_0 : i32, i32, i32
  }
  func.func @transform_2(%arg0: i32, %arg1: i32) -> (i32, i32) {
    %c0_i32 = arith.constant 0 : i32
    %c0_i32_0 = arith.constant 0 : i32
    return %arg0, %c0_i32 : i32, i32
  }
  func.func @transform_3(%arg0: i32, %arg1: i32) -> (i32, i32, i32) {
    %c0_i32 = arith.constant 0 : i32
    %c0_i32_0 = arith.constant 0 : i32
    %c0_i32_1 = arith.constant 0 : i32
    return %arg0, %c0_i32, %c0_i32_0 : i32, i32, i32
  }
  func.func @transform_4(%arg0: i32, %arg1: i32) -> (i32, i32) {
    %c0_i32 = arith.constant 0 : i32
    %c0_i32_0 = arith.constant 0 : i32
    %c0_i32_1 = arith.constant 0 : i32
    return %c0_i32, %c0_i32_0 : i32, i32
  }
  func.func @transform_5(%arg0: i32, %arg1: i32) -> (i32, i32) {
    %c0_i32 = arith.constant 0 : i32
    %c0_i32_0 = arith.constant 0 : i32
    %c0_i32_1 = arith.constant 0 : i32
    return %c0_i32, %c0_i32_0 : i32, i32
  }
  func.func @transform_6(%arg0: i32, %arg1: i32) -> (i32, i32) {
    %c0_i32 = arith.constant 0 : i32
    %c0_i32_0 = arith.constant 0 : i32
    %c0_i32_1 = arith.constant 0 : i32
    return %c0_i32, %c0_i32_0 : i32, i32
  }
  func.func @transform_7(%arg0: i32, %arg1: i32) -> (i32, i32) {
    %c0_i32 = arith.constant 0 : i32
    %c0_i32_0 = arith.constant 0 : i32
    %c0_i32_1 = arith.constant 0 : i32
    return %c0_i32, %c0_i32_0 : i32, i32
  }
  func.func @transform_8(%arg0: i32, %arg1: i32) -> (i32, i32) {
    %c0_i32 = arith.constant 0 : i32
    %c0_i32_0 = arith.constant 0 : i32
    %c0_i32_1 = arith.constant 0 : i32
    return %c0_i32, %c0_i32_0 : i32, i32
  }
  func.func @transform_9(%arg0: i32, %arg1: i32) -> (i32, i32) {
    %c0_i32 = arith.constant 0 : i32
    %c0_i32_0 = arith.constant 0 : i32
    %c0_i32_1 = arith.constant 0 : i32
    return %c0_i32, %c0_i32_0 : i32, i32
  }
  func.func @transform_10(%arg0: i32, %arg1: i32) -> (i32, i32) {
    %c0_i32 = arith.constant 0 : i32
    %c0_i32_0 = arith.constant 0 : i32
    %c0_i32_1 = arith.constant 0 : i32
    return %c0_i32, %c0_i32_0 : i32, i32
  }
  func.func @transform_11(%arg0: i32, %arg1: i32) -> (i32, i32) {
    %c0_i32 = arith.constant 0 : i32
    %c0_i32_0 = arith.constant 0 : i32
    %c0_i32_1 = arith.constant 0 : i32
    return %c0_i32, %c0_i32_0 : i32, i32
  }
  func.func @transform_12(%arg0: i32, %arg1: i32) -> (i32, i32) {
    %c0_i32 = arith.constant 0 : i32
    %c0_i32_0 = arith.constant 0 : i32
    %c0_i32_1 = arith.constant 0 : i32
    return %c0_i32, %c0_i32_0 : i32, i32
  }
  func.func @transform_13(%arg0: i32, %arg1: i32) -> (i32, i32) {
    %c0_i32 = arith.constant 0 : i32
    %c0_i32_0 = arith.constant 0 : i32
    %c0_i32_1 = arith.constant 0 : i32
    return %c0_i32, %c0_i32_0 : i32, i32
  }
  func.func @transform_14(%arg0: i32, %arg1: i32) -> (i32, i32, i32) {
    %c0_i32 = arith.constant 0 : i32
    %c0_i32_0 = arith.constant 0 : i32
    return %arg1, %arg0, %c0_i32 : i32, i32, i32
  }
  func.func @transform_15(%arg0: i32, %arg1: i32) -> (i32, i32) {
    %c0_i32 = arith.constant 0 : i32
    %c0_i32_0 = arith.constant 0 : i32
    return %arg0, %c0_i32 : i32, i32
  }
}

</mosaic_0001>

<llo_original>
// kernel: tpu_custom_call.1
$region0: #{tpu_custom_call.1}
  #allocation0 [shape = 'u32[]', space=smem, size = 0x4, offset = 0x4, fixed_abs, tag = 'smem constant byte address 0x4 - core index']
  #allocation1 [shape = 'u32[72,128]{1,0:T(1,128)}', space=vmem, size = 0x9000, scoped, tag = 'internal scratch']
  #allocation2 [shape = 'f32[2,32]{1,0:T(2,128)}', space=vmem, size = 0x400, scoped, tag = 'scratch operand']
  #allocation3 [shape = 'f32[2,8,32]{2,1,0:T(8,128)}', space=vmem, size = 0x2000, scoped, tag = 'scratch operand']
  %s0 = inlined_call_operand.vmem [shape: f32[8,2,32], index: 0, kind: input, shape index: {}]
  %s1 = inlined_call_operand.hbm [shape: f32[2,8,64], index: 1, kind: input, shape index: {}]
  %s2 = inlined_call_operand.vmem [shape: f32[2,64], index: 2, kind: input, shape index: {}]
  %s3 = inlined_call_operand.vmem [shape: f32[2,8,1], index: 3, kind: input, shape index: {}]
  %s4 = inlined_call_operand.vmem [shape: f32[64,32], index: 4, kind: input, shape index: {}]
  %s5 = inlined_call_operand.vmem [shape: f32[32,128], index: 5, kind: input, shape index: {}]
  %s6 = inlined_call_operand.vmem [shape: f32[1,32], index: 6, kind: input, shape index: {}]
  %s7 = inlined_call_operand.vmem [shape: f32[64,32], index: 7, kind: input, shape index: {}]
  %s8 = inlined_call_operand.vmem [shape: f32[1,32], index: 8, kind: input, shape index: {}]
  %s9 = inlined_call_operand.vmem [shape: f32[32,128], index: 9, kind: input, shape index: {}]
  %s10 = inlined_call_operand.vmem [shape: f32[64,128], index: 10, kind: input, shape index: {}]
  %s11 = inlined_call_operand.vmem [shape: f32[32,32], index: 11, kind: input, shape index: {}]
  %s12 = inlined_call_operand.vmem [shape: f32[1,96], index: 12, kind: input, shape index: {}]
  %s13 = inlined_call_operand.vmem [shape: f32[1,96], index: 13, kind: input, shape index: {}]
  %s14 = inlined_call_operand.hbm [shape: f32[8,2,64], index: 14, kind: output, shape index: {0}]
  %s15 = inlined_call_operand.hbm [shape: f32[2,32], index: 15, kind: output, shape index: {1}]
  %16 = xla_tuple %s14, %s15
  %s17 = sld [smem:[#allocation0]]
  $region109: #{tpu_custom_call.1} parent=0
    _
  %s19 = ssub.s32 1, %s17
  %s20 = scalar_select 0, %s19, %s17
  $region1: #{tpu_custom_call.1} parent=0
    #allocation4 [shape = 'u8[8192]{0}', space=vmem, size = 0x2000, scoped, tag = 'input window, operand 1, single buffered']
    #allocation5 [shape = 's32[2]{0}', space=sflag, size = 0x8, scoped, tag = 'scoped memory for tpu_custom_call.1']
    #allocation6 [shape = 's32[2]{0}', space=sflag, size = 0x8, scoped, tag = 'scoped memory for tpu_custom_call.1']
    #allocation7 [shape = 'u8[2048]{0}', space=vmem, size = 0x800, scoped, tag = 'output window, operand 0']
    #allocation8 [shape = 'u8[1024]{0}', space=vmem, size = 0x400, scoped, tag = 'output window, operand 1, single buffered']
    #allocation9 [shape = 's32[1]{0}', space=sflag, size = 0x4, scoped, tag = 'scoped memory for tpu_custom_call.1']
    %21 = vsyncpa [#allocation5], 0
    %22 = vsyncpa [#allocation6], 0
    %s23 = scalar_lea.sflag [#allocation6], 1
    %24 = vsyncpa %s23, 0
    %25 = vsyncpa [#allocation9], 0
    loop: start=0, step=1, limit=10
    $region2: #{tpu_custom_call.1} parent=1 // loop_pre_header
      _
    $region3: #{tpu_custom_call.1} parent=1 // loop_header
      %s27 = sphi 0, %s31
      %p28 = scmp.ge.s32.totalorder %s27, 10
      %s34 = sphi 0, %s46
      %s35 = sphi 0, %s42
      %s36 = sphi 0, %s34
      %s37 = sphi 0, %s35
      %s38 = sphi 0, %s36
      %s39 = sphi 0, %s37
      %s51 = sphi 0, %s53
      %s54 = sphi 0, %s51
      %s55 = sphi 0, %s54
      %s71 = sphi 0, %s55
      %s77 = sphi 0, %s79
      %s80 = sphi 0, %s77
      %s81 = sphi 0, %s80
      %s97 = sphi 0, %s81
      %s103 = sphi 0, %s105
      %s106 = sphi 0, %s103
      %s107 = sphi 0, %s106
      %s123 = sphi 0, %s107
      %s129 = sphi 0, %s131
      %s132 = sphi 0, %s129
      %s133 = sphi 0, %s132
      %s149 = sphi 0, %s133
      %s153 = sphi 0, %s153
      %s155 = sphi 0, %s153
      %s156 = sphi 0, %s155
      %s170 = sphi 0, %s156
      %s174 = sphi 0, %s174
      %s176 = sphi 0, %s174
      %s177 = sphi 0, %s176
      %s191 = sphi 0, %s177
      %s195 = sphi 0, %s195
      %s197 = sphi 0, %s195
      %s198 = sphi 0, %s197
      %s212 = sphi 0, %s198
      %s216 = sphi 0, %s216
      %s218 = sphi 0, %s216
      %s219 = sphi 0, %s218
      %s233 = sphi 0, %s219
      %s237 = sphi 0, %s237
      %s239 = sphi 0, %s237
      %s240 = sphi 0, %s239
      %s254 = sphi 0, %s240
      %s258 = sphi 0, %s258
      %s260 = sphi 0, %s258
      %s261 = sphi 0, %s260
      %s275 = sphi 0, %s261
      %s279 = sphi 0, %s279
      %s281 = sphi 0, %s279
      %s282 = sphi 0, %s281
      %s296 = sphi 0, %s282
      %s300 = sphi 0, %s300
      %s302 = sphi 0, %s300
      %s303 = sphi 0, %s302
      %s317 = sphi 0, %s303
      %s321 = sphi 0, %s321
      %s323 = sphi 0, %s321
      %s324 = sphi 0, %s323
      %s338 = sphi 0, %s324
      %s342 = sphi 0, %s342
      %s344 = sphi 0, %s342
      %s345 = sphi 0, %s344
      %s359 = sphi 0, %s345
      %s367 = sphi 0, %s369
      %s370 = sphi 0, %s367
      %s371 = sphi 0, %s370
      %s387 = sphi 0, %s371
      %s393 = sphi 0, %s395
      %s396 = sphi 0, %s393
      %s397 = sphi 0, %s396
      %s413 = sphi 0, %s397
    $region4: #{tpu_custom_call.1} parent=1 // loop_header_branch
      %30 = sbr.rel (%p28) target = $region8
    $region5: #{tpu_custom_call.1} parent=1 // loop_body
      %s32 = ssub.s32 %s27, 1
      %s33 = ssub.s32 %s27, 2
      %s40 = sadd.s32 1, %s35
      %p41 = scmp.ge.s32.totalorder %s40, 8
      %s42 = scalar_select %p41, 0, %s40
      %s43 = sadd.s32 1, %s34
      %s44 = scalar_select %p41, %s43, %s34
      %p45 = scmp.ge.s32.totalorder %s44, 1
      %s46 = scalar_select %p45, 0, %s44
      %s47 = ssub.s32 %s35, %s42
      %s48 = ssub.s32 %s34, %s46
      %s49 = sor.u32 %s47, %s48
      %p50 = scmp.eq.s32.totalorder %s49, 0
      %s52 = sadd.s32 %s51, 1
      %s53 = scalar_select %p50, %s51, %s52
      %p56 = pneg %p50
      %p57 = scmp.eq.s32.totalorder %s27, 7
      %p58 = por %p56, %p57
      %p59 = scmp.ne.s32.totalorder %s51, %s54
      %p60 = scmp.eq.s32.totalorder %s27, 0
      %p61 = por %p59, %p60
      %p62 = scmp.ne.s32.totalorder %s51, %s54
      %p63 = scmp.eq.s32.totalorder %s32, 7
      %p64 = por %p62, %p63
      %p65 = scmp.ne.s32.totalorder %s54, %s55
      %p66 = scmp.eq.s32.totalorder %s32, 0
      %p67 = por %p65, %p66
      %p68 = scmp.ne.s32.totalorder %s54, %s55
      %p69 = scmp.eq.s32.totalorder %s33, 7
      %p70 = por %p68, %p69
      %p72 = scmp.ne.s32.totalorder %s55, %s71
      %p73 = scmp.eq.s32.totalorder %s33, 0
      %p74 = por %p72, %p73
      %s75 = ssub.s32 %s34, %s46
      %p76 = scmp.eq.s32.totalorder %s75, 0
      %s78 = sadd.s32 %s77, 1
      %s79 = scalar_select %p76, %s77, %s78
      %p82 = pneg %p76
      %p83 = scmp.eq.s32.totalorder %s27, 7
      %p84 = por %p82, %p83
      %p85 = scmp.ne.s32.totalorder %s77, %s80
      %p86 = scmp.eq.s32.totalorder %s27, 0
      %p87 = por %p85, %p86
      %p88 = scmp.ne.s32.totalorder %s77, %s80
      %p89 = scmp.eq.s32.totalorder %s32, 7
      %p90 = por %p88, %p89
      %p91 = scmp.ne.s32.totalorder %s80, %s81
      %p92 = scmp.eq.s32.totalorder %s32, 0
      %p93 = por %p91, %p92
      %p94 = scmp.ne.s32.totalorder %s80, %s81
      %p95 = scmp.eq.s32.totalorder %s33, 7
      %p96 = por %p94, %p95
      %p98 = scmp.ne.s32.totalorder %s81, %s97
      %p99 = scmp.eq.s32.totalorder %s33, 0
      %p100 = por %p98, %p99
      %s101 = ssub.s32 %s34, %s46
      %p102 = scmp.eq.s32.totalorder %s101, 0
      %s104 = sadd.s32 %s103, 1
      %s105 = scalar_select %p102, %s103, %s104
      %p108 = pneg %p102
      %p109 = scmp.eq.s32.totalorder %s27, 7
      %p110 = por %p108, %p109
      %p111 = scmp.ne.s32.totalorder %s103, %s106
      %p112 = scmp.eq.s32.totalorder %s27, 0
      %p113 = por %p111, %p112
      %p114 = scmp.ne.s32.totalorder %s103, %s106
      %p115 = scmp.eq.s32.totalorder %s32, 7
      %p116 = por %p114, %p115
      %p117 = scmp.ne.s32.totalorder %s106, %s107
      %p118 = scmp.eq.s32.totalorder %s32, 0
      %p119 = por %p117, %p118
      %p120 = scmp.ne.s32.totalorder %s106, %s107
      %p121 = scmp.eq.s32.totalorder %s33, 7
      %p122 = por %p120, %p121
      %p124 = scmp.ne.s32.totalorder %s107, %s123
      %p125 = scmp.eq.s32.totalorder %s33, 0
      %p126 = por %p124, %p125
      %s127 = ssub.s32 %s34, %s46
      %p128 = scmp.eq.s32.totalorder %s127, 0
      %s130 = sadd.s32 %s129, 1
      %s131 = scalar_select %p128, %s129, %s130
      %p134 = pneg %p128
      %p135 = scmp.eq.s32.totalorder %s27, 7
      %p136 = por %p134, %p135
      %p137 = scmp.ne.s32.totalorder %s129, %s132
      %p138 = scmp.eq.s32.totalorder %s27, 0
      %p139 = por %p137, %p138
      %p140 = scmp.ne.s32.totalorder %s129, %s132
      %p141 = scmp.eq.s32.totalorder %s32, 7
      %p142 = por %p140, %p141
      %p143 = scmp.ne.s32.totalorder %s132, %s133
      %p144 = scmp.eq.s32.totalorder %s32, 0
      %p145 = por %p143, %p144
      %p146 = scmp.ne.s32.totalorder %s132, %s133
      %p147 = scmp.eq.s32.totalorder %s33, 7
      %p148 = por %p146, %p147
      %p150 = scmp.ne.s32.totalorder %s133, %s149
      %p151 = scmp.eq.s32.totalorder %s33, 0
      %p152 = por %p150, %p151
      %s154 = sadd.s32 %s153, 1
      %p157 = scmp.eq.s32.totalorder %s27, 7
      %p158 = scmp.ne.s32.totalorder %s153, %s155
      %p159 = scmp.eq.s32.totalorder %s27, 0
      %p160 = por %p158, %p159
      %p161 = scmp.ne.s32.totalorder %s153, %s155
      %p162 = scmp.eq.s32.totalorder %s32, 7
      %p163 = por %p161, %p162
      %p164 = scmp.ne.s32.totalorder %s155, %s156
      %p165 = scmp.eq.s32.totalorder %s32, 0
      %p166 = por %p164, %p165
      %p167 = scmp.ne.s32.totalorder %s155, %s156
      %p168 = scmp.eq.s32.totalorder %s33, 7
      %p169 = por %p167, %p168
      %p171 = scmp.ne.s32.totalorder %s156, %s170
      %p172 = scmp.eq.s32.totalorder %s33, 0
      %p173 = por %p171, %p172
      %s175 = sadd.s32 %s174, 1
      %p178 = scmp.eq.s32.totalorder %s27, 7
      %p179 = scmp.ne.s32.totalorder %s174, %s176
      %p180 = scmp.eq.s32.totalorder %s27, 0
      %p181 = por %p179, %p180
      %p182 = scmp.ne.s32.totalorder %s174, %s176
      %p183 = scmp.eq.s32.totalorder %s32, 7
      %p184 = por %p182, %p183
      %p185 = scmp.ne.s32.totalorder %s176, %s177
      %p186 = scmp.eq.s32.totalorder %s32, 0
      %p187 = por %p185, %p186
      %p188 = scmp.ne.s32.totalorder %s176, %s177
      %p189 = scmp.eq.s32.totalorder %s33, 7
      %p190 = por %p188, %p189
      %p192 = scmp.ne.s32.totalorder %s177, %s191
      %p193 = scmp.eq.s32.totalorder %s33, 0
      %p194 = por %p192, %p193
      %s196 = sadd.s32 %s195, 1
      %p199 = scmp.eq.s32.totalorder %s27, 7
      %p200 = scmp.ne.s32.totalorder %s195, %s197
      %p201 = scmp.eq.s32.totalorder %s27, 0
      %p202 = por %p200, %p201
      %p203 = scmp.ne.s32.totalorder %s195, %s197
      %p204 = scmp.eq.s32.totalorder %s32, 7
      %p205 = por %p203, %p204
      %p206 = scmp.ne.s32.totalorder %s197, %s198
      %p207 = scmp.eq.s32.totalorder %s32, 0
      %p208 = por %p206, %p207
      %p209 = scmp.ne.s32.totalorder %s197, %s198
      %p210 = scmp.eq.s32.totalorder %s33, 7
      %p211 = por %p209, %p210
      %p213 = scmp.ne.s32.totalorder %s198, %s212
      %p214 = scmp.eq.s32.totalorder %s33, 0
      %p215 = por %p213, %p214
      %s217 = sadd.s32 %s216, 1
      %p220 = scmp.eq.s32.totalorder %s27, 7
      %p221 = scmp.ne.s32.totalorder %s216, %s218
      %p222 = scmp.eq.s32.totalorder %s27, 0
      %p223 = por %p221, %p222
      %p224 = scmp.ne.s32.totalorder %s216, %s218
      %p225 = scmp.eq.s32.totalorder %s32, 7
      %p226 = por %p224, %p225
      %p227 = scmp.ne.s32.totalorder %s218, %s219
      %p228 = scmp.eq.s32.totalorder %s32, 0
      %p229 = por %p227, %p228
      %p230 = scmp.ne.s32.totalorder %s218, %s219
      %p231 = scmp.eq.s32.totalorder %s33, 7
      %p232 = por %p230, %p231
      %p234 = scmp.ne.s32.totalorder %s219, %s233
      %p235 = scmp.eq.s32.totalorder %s33, 0
      %p236 = por %p234, %p235
      %s238 = sadd.s32 %s237, 1
      %p241 = scmp.eq.s32.totalorder %s27, 7
      %p242 = scmp.ne.s32.totalorder %s237, %s239
      %p243 = scmp.eq.s32.totalorder %s27, 0
      %p244 = por %p242, %p243
      %p245 = scmp.ne.s32.totalorder %s237, %s239
      %p246 = scmp.eq.s32.totalorder %s32, 7
      %p247 = por %p245, %p246
      %p248 = scmp.ne.s32.totalorder %s239, %s240
      %p249 = scmp.eq.s32.totalorder %s32, 0
      %p250 = por %p248, %p249
      %p251 = scmp.ne.s32.totalorder %s239, %s240
      %p252 = scmp.eq.s32.totalorder %s33, 7
      %p253 = por %p251, %p252
      %p255 = scmp.ne.s32.totalorder %s240, %s254
      %p256 = scmp.eq.s32.totalorder %s33, 0
      %p257 = por %p255, %p256
      %s259 = sadd.s32 %s258, 1
      %p262 = scmp.eq.s32.totalorder %s27, 7
      %p263 = scmp.ne.s32.totalorder %s258, %s260
      %p264 = scmp.eq.s32.totalorder %s27, 0
      %p265 = por %p263, %p264
      %p266 = scmp.ne.s32.totalorder %s258, %s260
      %p267 = scmp.eq.s32.totalorder %s32, 7
      %p268 = por %p266, %p267
      %p269 = scmp.ne.s32.totalorder %s260, %s261
      %p270 = scmp.eq.s32.totalorder %s32, 0
      %p271 = por %p269, %p270
      %p272 = scmp.ne.s32.totalorder %s260, %s261
      %p273 = scmp.eq.s32.totalorder %s33, 7
      %p274 = por %p272, %p273
      %p276 = scmp.ne.s32.totalorder %s261, %s275
      %p277 = scmp.eq.s32.totalorder %s33, 0
      %p278 = por %p276, %p277
      %s280 = sadd.s32 %s279, 1
      %p283 = scmp.eq.s32.totalorder %s27, 7
      %p284 = scmp.ne.s32.totalorder %s279, %s281
      %p285 = scmp.eq.s32.totalorder %s27, 0
      %p286 = por %p284, %p285
      %p287 = scmp.ne.s32.totalorder %s279, %s281
      %p288 = scmp.eq.s32.totalorder %s32, 7
      %p289 = por %p287, %p288
      %p290 = scmp.ne.s32.totalorder %s281, %s282
      %p291 = scmp.eq.s32.totalorder %s32, 0
      %p292 = por %p290, %p291
      %p293 = scmp.ne.s32.totalorder %s281, %s282
      %p294 = scmp.eq.s32.totalorder %s33, 7
      %p295 = por %p293, %p294
      %p297 = scmp.ne.s32.totalorder %s282, %s296
      %p298 = scmp.eq.s32.totalorder %s33, 0
      %p299 = por %p297, %p298
      %s301 = sadd.s32 %s300, 1
      %p304 = scmp.eq.s32.totalorder %s27, 7
      %p305 = scmp.ne.s32.totalorder %s300, %s302
      %p306 = scmp.eq.s32.totalorder %s27, 0
      %p307 = por %p305, %p306
      %p308 = scmp.ne.s32.totalorder %s300, %s302
      %p309 = scmp.eq.s32.totalorder %s32, 7
      %p310 = por %p308, %p309
      %p311 = scmp.ne.s32.totalorder %s302, %s303
      %p312 = scmp.eq.s32.totalorder %s32, 0
      %p313 = por %p311, %p312
      %p314 = scmp.ne.s32.totalorder %s302, %s303
      %p315 = scmp.eq.s32.totalorder %s33, 7
      %p316 = por %p314, %p315
      %p318 = scmp.ne.s32.totalorder %s303, %s317
      %p319 = scmp.eq.s32.totalorder %s33, 0
      %p320 = por %p318, %p319
      %s322 = sadd.s32 %s321, 1
      %p325 = scmp.eq.s32.totalorder %s27, 7
      %p326 = scmp.ne.s32.totalorder %s321, %s323
      %p327 = scmp.eq.s32.totalorder %s27, 0
      %p328 = por %p326, %p327
      %p329 = scmp.ne.s32.totalorder %s321, %s323
      %p330 = scmp.eq.s32.totalorder %s32, 7
      %p331 = por %p329, %p330
      %p332 = scmp.ne.s32.totalorder %s323, %s324
      %p333 = scmp.eq.s32.totalorder %s32, 0
      %p334 = por %p332, %p333
      %p335 = scmp.ne.s32.totalorder %s323, %s324
      %p336 = scmp.eq.s32.totalorder %s33, 7
      %p337 = por %p335, %p336
      %p339 = scmp.ne.s32.totalorder %s324, %s338
      %p340 = scmp.eq.s32.totalorder %s33, 0
      %p341 = por %p339, %p340
      %s343 = sadd.s32 %s342, 1
      %p346 = scmp.eq.s32.totalorder %s27, 7
      %p347 = scmp.ne.s32.totalorder %s342, %s344
      %p348 = scmp.eq.s32.totalorder %s27, 0
      %p349 = por %p347, %p348
      %p350 = scmp.ne.s32.totalorder %s342, %s344
      %p351 = scmp.eq.s32.totalorder %s32, 7
      %p352 = por %p350, %p351
      %p353 = scmp.ne.s32.totalorder %s344, %s345
      %p354 = scmp.eq.s32.totalorder %s32, 0
      %p355 = por %p353, %p354
      %p356 = scmp.ne.s32.totalorder %s344, %s345
      %p357 = scmp.eq.s32.totalorder %s33, 7
      %p358 = por %p356, %p357
      %p360 = scmp.ne.s32.totalorder %s345, %s359
      %p361 = scmp.eq.s32.totalorder %s33, 0
      %p362 = por %p360, %p361
      %s363 = ssub.s32 %s35, %s42
      %s364 = ssub.s32 %s34, %s46
      %s365 = sor.u32 %s363, %s364
      %p366 = scmp.eq.s32.totalorder %s365, 0
      %s368 = sadd.s32 %s367, 1
      %s369 = scalar_select %p366, %s367, %s368
      %p372 = pneg %p366
      %p373 = scmp.eq.s32.totalorder %s27, 7
      %p374 = por %p372, %p373
      %p375 = scmp.ne.s32.totalorder %s367, %s370
      %p376 = scmp.eq.s32.totalorder %s27, 0
      %p377 = por %p375, %p376
      %p378 = scmp.ne.s32.totalorder %s367, %s370
      %p379 = scmp.eq.s32.totalorder %s32, 7
      %p380 = por %p378, %p379
      %p381 = scmp.ne.s32.totalorder %s370, %s371
      %p382 = scmp.eq.s32.totalorder %s32, 0
      %p383 = por %p381, %p382
      %p384 = scmp.ne.s32.totalorder %s370, %s371
      %p385 = scmp.eq.s32.totalorder %s33, 7
      %p386 = por %p384, %p385
      %p388 = scmp.ne.s32.totalorder %s371, %s387
      %p389 = scmp.eq.s32.totalorder %s33, 0
      %p390 = por %p388, %p389
      %s391 = ssub.s32 %s34, %s46
      %p392 = scmp.eq.s32.totalorder %s391, 0
      %s394 = sadd.s32 %s393, 1
      %s395 = scalar_select %p392, %s393, %s394
      %p398 = pneg %p392
      %p399 = scmp.eq.s32.totalorder %s27, 7
      %p400 = por %p398, %p399
      %p401 = scmp.ne.s32.totalorder %s393, %s396
      %p402 = scmp.eq.s32.totalorder %s27, 0
      %p403 = por %p401, %p402
      %p404 = scmp.ne.s32.totalorder %s393, %s396
      %p405 = scmp.eq.s32.totalorder %s32, 7
      %p406 = por %p404, %p405
      %p407 = scmp.ne.s32.totalorder %s396, %s397
      %p408 = scmp.eq.s32.totalorder %s32, 0
      %p409 = por %p407, %p408
      %p410 = scmp.ne.s32.totalorder %s396, %s397
      %p411 = scmp.eq.s32.totalorder %s33, 7
      %p412 = por %p410, %p411
      %p414 = scmp.ne.s32.totalorder %s397, %s413
      %p415 = scmp.eq.s32.totalorder %s33, 0
      %p416 = por %p414, %p415
      %p417 = scmp.le.s32.totalorder 1, %s27
      %p418 = scmp.lt.s32.totalorder %s27, 9
      %p419 = pnand %p417, %p418
      %p420 = pneg %p419
      // Predicated region
      $region9: #{tpu_custom_call.1} parent=5 // pred_check
        _
      $region10: #{tpu_custom_call.1} parent=5 // pred_check_branch
        %422 = sbr.rel (%p419) target = $region12
      $region11: #{tpu_custom_call.1} parent=5 // pred_region
        %s423 = ssub.s32 %s27, 1
        // Predicated region
        $region13: #{tpu_custom_call.1} parent=11 // pred_check
          %p424 = pneg %p93
        $region14: #{tpu_custom_call.1} parent=11 // pred_check_branch
          %426 = sbr.rel (%p424) target = $region16
        $region15: #{tpu_custom_call.1} parent=11 // pred_region
          %s427 = smul.u32 2, %s36
          %429 = vsyncadd [#allocation5], 0
          %s430 = smul.addr %s427, 8
          %s431 = scalar_lea.hbm %s1, %s430
          %s432 = sshll.u32 %s431, 4
          %s433 = int_to_ptr.hbm [resolvable:$true] %s432
          %s434 = sshll.u32 [#allocation4], 4
          %s435 = int_to_ptr.vmem [resolvable:$true] %s434
          %440 = dma.hbm_to_vmem [thread:$0]  %s433, 256, %s435, [#allocation5], 128, 128, 8
        $region16: #{tpu_custom_call.1} parent=11 // pred_fallthru
          _
        // Predicated region
        $region17: #{tpu_custom_call.1} parent=11 // pred_check
          %p441 = pneg %p119
        $region18: #{tpu_custom_call.1} parent=11 // pred_check_branch
          %443 = sbr.rel (%p441) target = $region20
        $region19: #{tpu_custom_call.1} parent=11 // pred_region
          %p444 = scmp.lt.s32.totalorder %s36, 0
          %s445 = scalar_select %p444, %s36, 0
          %s446 = smul.addr %s445, 2
          %s447 = scalar_lea.vmem %s2, %s446
        $region20: #{tpu_custom_call.1} parent=11 // pred_fallthru
          _
        // Predicated region
        $region21: #{tpu_custom_call.1} parent=11 // pred_check
          %p448 = pneg %p145
        $region22: #{tpu_custom_call.1} parent=11 // pred_check_branch
          %450 = sbr.rel (%p448) target = $region24
        $region23: #{tpu_custom_call.1} parent=11 // pred_region
          %s451 = smul.u32 2, %s36
          %p452 = scmp.lt.s32.totalorder %s451, 1
          %s453 = scalar_select %p452, %s451, 1
          %s454 = smul.addr %s453, 8
          %s455 = scalar_lea.vmem %s3, %s454
          %s456 = smul.u32 2, %s36
        $region24: #{tpu_custom_call.1} parent=11 // pred_fallthru
          _
        // Predicated region
        $region25: #{tpu_custom_call.1} parent=11 // pred_check
          %p457 = pneg %p166
        $region26: #{tpu_custom_call.1} parent=11 // pred_check_branch
          %459 = sbr.rel (%p457) target = $region28
        $region27: #{tpu_custom_call.1} parent=11 // pred_region
          _
        $region28: #{tpu_custom_call.1} parent=11 // pred_fallthru
          _
        // Predicated region
        $region29: #{tpu_custom_call.1} parent=11 // pred_check
          %p460 = pneg %p187
        $region30: #{tpu_custom_call.1} parent=11 // pred_check_branch
          %462 = sbr.rel (%p460) target = $region32
        $region31: #{tpu_custom_call.1} parent=11 // pred_region
          _
        $region32: #{tpu_custom_call.1} parent=11 // pred_fallthru
          _
        // Predicated region
        $region33: #{tpu_custom_call.1} parent=11 // pred_check
          %p463 = pneg %p208
        $region34: #{tpu_custom_call.1} parent=11 // pred_check_branch
          %465 = sbr.rel (%p463) target = $region36
        $region35: #{tpu_custom_call.1} parent=11 // pred_region
          _
        $region36: #{tpu_custom_call.1} parent=11 // pred_fallthru
          _
        // Predicated region
        $region37: #{tpu_custom_call.1} parent=11 // pred_check
          %p466 = pneg %p229
        $region38: #{tpu_custom_call.1} parent=11 // pred_check_branch
          %468 = sbr.rel (%p466) target = $region40
        $region39: #{tpu_custom_call.1} parent=11 // pred_region
          _
        $region40: #{tpu_custom_call.1} parent=11 // pred_fallthru
          _
        // Predicated region
        $region41: #{tpu_custom_call.1} parent=11 // pred_check
          %p469 = pneg %p250
        $region42: #{tpu_custom_call.1} parent=11 // pred_check_branch
          %471 = sbr.rel (%p469) target = $region44
        $region43: #{tpu_custom_call.1} parent=11 // pred_region
          _
        $region44: #{tpu_custom_call.1} parent=11 // pred_fallthru
          _
        // Predicated region
        $region45: #{tpu_custom_call.1} parent=11 // pred_check
          %p472 = pneg %p271
        $region46: #{tpu_custom_call.1} parent=11 // pred_check_branch
          %474 = sbr.rel (%p472) target = $region48
        $region47: #{tpu_custom_call.1} parent=11 // pred_region
          _
        $region48: #{tpu_custom_call.1} parent=11 // pred_fallthru
          _
        // Predicated region
        $region49: #{tpu_custom_call.1} parent=11 // pred_check
          %p475 = pneg %p292
        $region50: #{tpu_custom_call.1} parent=11 // pred_check_branch
          %477 = sbr.rel (%p475) target = $region52
        $region51: #{tpu_custom_call.1} parent=11 // pred_region
          _
        $region52: #{tpu_custom_call.1} parent=11 // pred_fallthru
          _
        // Predicated region
        $region53: #{tpu_custom_call.1} parent=11 // pred_check
          %p478 = pneg %p313
        $region54: #{tpu_custom_call.1} parent=11 // pred_check_branch
          %480 = sbr.rel (%p478) target = $region56
        $region55: #{tpu_custom_call.1} parent=11 // pred_region
          _
        $region56: #{tpu_custom_call.1} parent=11 // pred_fallthru
          _
        // Predicated region
        $region57: #{tpu_custom_call.1} parent=11 // pred_check
          %p481 = pneg %p334
        $region58: #{tpu_custom_call.1} parent=11 // pred_check_branch
          %483 = sbr.rel (%p481) target = $region60
        $region59: #{tpu_custom_call.1} parent=11 // pred_region
          _
        $region60: #{tpu_custom_call.1} parent=11 // pred_fallthru
          _
        // Predicated region
        $region61: #{tpu_custom_call.1} parent=11 // pred_check
          %p484 = pneg %p355
        $region62: #{tpu_custom_call.1} parent=11 // pred_check_branch
          %486 = sbr.rel (%p484) target = $region64
        $region63: #{tpu_custom_call.1} parent=11 // pred_region
          _
        $region64: #{tpu_custom_call.1} parent=11 // pred_fallthru
          _
      $region12: #{tpu_custom_call.1} parent=5 // pred_fallthru
        _
      %p487 = scmp.lt.s32.totalorder %s27, 8
      // Predicated region
      $region65: #{tpu_custom_call.1} parent=5 // pred_check
        %p488 = pneg %p487
      $region66: #{tpu_custom_call.1} parent=5 // pred_check_branch
        %490 = sbr.rel (%p488) target = $region68
      $region67: #{tpu_custom_call.1} parent=5 // pred_region
        // Predicated region
        $region69: #{tpu_custom_call.1} parent=67 // pred_check
          %p491 = pneg %p61
        $region70: #{tpu_custom_call.1} parent=67 // pred_check_branch
          %493 = sbr.rel (%p491) target = $region72
        $region71: #{tpu_custom_call.1} parent=67 // pred_region
          %p494 = scmp.lt.s32.totalorder %s35, 7
          %s495 = scalar_select %p494, %s35, 7
          %p496 = scmp.lt.s32.totalorder %s34, 0
          %s497 = scalar_select %p496, %s34, 0
          %s498 = sadd.s32 %s497, %s495
          %s499 = smul.addr %s498, 2
          %s500 = scalar_lea.vmem %s0, %s499
        $region72: #{tpu_custom_call.1} parent=67 // pred_fallthru
          _
      $region68: #{tpu_custom_call.1} parent=5 // pred_fallthru
        _
      %p501 = scmp.le.s32.totalorder 1, %s27
      %p502 = scmp.lt.s32.totalorder %s27, 9
      %p503 = pnand %p501, %p502
      %p504 = pneg %p503
      // Predicated region
      $region73: #{tpu_custom_call.1} parent=5 // pred_check
        _
      $region74: #{tpu_custom_call.1} parent=5 // pred_check_branch
        %506 = sbr.rel (%p503) target = $region76
      $region75: #{tpu_custom_call.1} parent=5 // pred_region
        %s507 = ssub.s32 %s27, 1
        // Predicated region
        $region77: #{tpu_custom_call.1} parent=75 // pred_check
          %p508 = pneg %p93
        $region78: #{tpu_custom_call.1} parent=75 // pred_check_branch
          %510 = sbr.rel (%p508) target = $region80
        $region79: #{tpu_custom_call.1} parent=75 // pred_region
          %512 = dma.done [#allocation5], 256
        $region80: #{tpu_custom_call.1} parent=75 // pred_fallthru
          _
        %p513 = scmp.lt.s32.totalorder %s37, 7
        %s514 = scalar_select %p513, %s37, 7
        %p515 = scmp.lt.s32.totalorder %s36, 0
        %s516 = scalar_select %p515, %s36, 0
        %s517 = sadd.s32 %s516, %s514
        %s518 = smul.addr %s517, 2
        %s519 = scalar_lea.vmem %s0, %s518
        %p520 = pneg %p67
        %p521 = pneg %p64
        %p522 = pneg %p93
        %p523 = pneg %p90
        %p524 = scmp.lt.s32.totalorder %s36, 0
        %s525 = scalar_select %p524, %s36, 0
        %s526 = smul.addr %s525, 2
        %s527 = scalar_lea.vmem %s2, %s526
        %p528 = pneg %p119
        %p529 = pneg %p116
        %s530 = smul.u32 2, %s36
        %p531 = scmp.lt.s32.totalorder %s530, 1
        %s532 = scalar_select %p531, %s530, 1
        %s533 = smul.addr %s532, 8
        %s534 = scalar_lea.vmem %s3, %s533
        %p535 = pneg %p145
        %p536 = pneg %p142
        %p537 = pneg %p166
        %p538 = pneg %p163
        %p539 = pneg %p187
        %p540 = pneg %p184
        %p541 = pneg %p208
        %p542 = pneg %p205
        %p543 = pneg %p229
        %p544 = pneg %p226
        %p545 = pneg %p250
        %p546 = pneg %p247
        %p547 = pneg %p271
        %p548 = pneg %p268
        %p549 = pneg %p292
        %p550 = pneg %p289
        %p551 = pneg %p313
        %p552 = pneg %p310
        %p553 = pneg %p334
        %p554 = pneg %p331
        %p555 = pneg %p355
        %p556 = pneg %p352
        %p557 = pneg %p383
        %p558 = pneg %p380
        %s559 = sand.u32 %s370, 1
        %s560 = scalar_lea.sflag [#allocation6], %s559
        %s561 = sand.u32 %s370, 1
        %s562 = smul.addr %s561, 2
        %s563 = scalar_lea.vmem [#allocation7], %s562
        %p564 = pneg %p409
        %p565 = pneg %p406
        %p566 = scmp.lt.s32.totalorder %s37, 7
        %s567 = scalar_select %p566, %s37, 7
        %p568 = scmp.lt.s32.totalorder %s36, 0
        %s569 = scalar_select %p568, %s36, 0
        %s570 = sadd.s32 %s569, %s567
        %s571 = smul.addr %s570, 2
        %s572 = scalar_lea.vmem %s0, %s571
        %s573 = smul.u32 2, %s36
        %p574 = scmp.lt.s32.totalorder %s36, 0
        %s575 = scalar_select %p574, %s36, 0
        %s576 = smul.addr %s575, 2
        %s577 = scalar_lea.vmem %s2, %s576
        %s578 = smul.u32 2, %s36
        %p579 = scmp.lt.s32.totalorder %s578, 1
        %s580 = scalar_select %p579, %s578, 1
        %s581 = smul.addr %s580, 8
        %s582 = scalar_lea.vmem %s3, %s581
        %s583 = smul.u32 2, %s36
        %p584 = scmp.eq.s32.totalorder %s37, 0
        // Predicated region
        $region81: #{tpu_custom_call.1} parent=75 // pred_check
          %p585 = pneg %p584
        $region82: #{tpu_custom_call.1} parent=75 // pred_check_branch
          %587 = sbr.rel (%p585) target = $region84
        $region83: #{tpu_custom_call.1} parent=75 // pred_region
          %v588 = vld [vmem:[%s577] sm:$0x3]
          %v589 = vld [vmem:[%s7] sm:$0xff]
          %v590 = vld [vmem:[%s7 + $0x8] sm:$0xff]
          %v591 = vld [vmem:[%s7 + $0x10] sm:$0xff]
          %v592 = vld [vmem:[%s7 + $0x18] sm:$0xff]
          %v593 = vld [vmem:[%s7 + $0x20] sm:$0xff]
          %v594 = vld [vmem:[%s7 + $0x28] sm:$0xff]
          %v595 = vld [vmem:[%s7 + $0x30] sm:$0xff]
          %v596 = vld [vmem:[%s7 + $0x38] sm:$0xff]
          %v597 = vld [vmem:[%s8] sm:$0x1]
          %v599 = vperm.slane %v597, 0
          %vm601 = vcmask 523264
          %v603 = vsel %vm601, %v588, 0
          %605 = vmatpush.msra.mxu0 0.0
          %606 = vmatpush.msra.mxu0 0.0
          %607 = vmatpush.msra.mxu0 0.0
          %608 = vmatpush.msra.mxu0 0.0
          %609 = vmatpush.msra.mxu0 0.0
          %610 = vmatpush.msra.mxu0 0.0
          %611 = vmatpush.msra.mxu0 0.0
          %612 = vmatpush.msra.mxu0 0.0
          %613 = vmatpush.msra.mxu0 %v596
          %614 = vmatpush.msra.mxu0 %v595
          %615 = vmatpush.msra.mxu0 %v594
          %616 = vmatpush.msra.mxu0 %v593
          %617 = vmatpush.msra.mxu0 %v592
          %618 = vmatpush.msra.mxu0 %v591
          %619 = vmatpush.msra.mxu0 %v590
          %620 = vmatpush.msra.mxu0 %v589
          %621 = vmatmul.f32.gmra.mxu0 %v603
          %v622 = vpop.f32.mrf.mxu0
          %v623 = vadd.f32 %v599, %v622
          %624 = vdwg.mxu0
          %v625 = vtanh.pop %v623
          %vm626 = vcmask 254976
          %627 = vst.msk [vmem:[#allocation2] sm:$0x3] %vm626, %v625
          %v628 = vld [vmem:[#allocation4] sm:$0xff]
          %v629 = vld [vmem:[#allocation4 + $0x8] sm:$0xff]
          %v630 = vld [vmem:[%s4] sm:$0xff]
          %v631 = vld [vmem:[%s4 + $0x8] sm:$0xff]
          %v632 = vld [vmem:[%s4 + $0x10] sm:$0xff]
          %v633 = vld [vmem:[%s4 + $0x18] sm:$0xff]
          %v634 = vld [vmem:[%s4 + $0x20] sm:$0xff]
          %v635 = vld [vmem:[%s4 + $0x28] sm:$0xff]
          %v636 = vld [vmem:[%s4 + $0x30] sm:$0xff]
          %v637 = vld [vmem:[%s4 + $0x38] sm:$0xff]
          %v639 = vsel %vm601, %v628, 0
          %v642 = vsel %vm601, %v629, 0
          %644 = vmatpush.msra.mxu0 0.0
          %645 = vmatpush.msra.mxu0 0.0
          %646 = vmatpush.msra.mxu0 0.0
          %647 = vmatpush.msra.mxu0 0.0
          %648 = vmatpush.msra.mxu0 0.0
          %649 = vmatpush.msra.mxu0 0.0
          %650 = vmatpush.msra.mxu0 0.0
          %651 = vmatpush.msra.mxu0 0.0
          %652 = vmatpush.msra.mxu0 %v637
          %653 = vmatpush.msra.mxu0 %v636
          %654 = vmatpush.msra.mxu0 %v635
          %655 = vmatpush.msra.mxu0 %v634
          %656 = vmatpush.msra.mxu0 %v633
          %657 = vmatpush.msra.mxu0 %v632
          %658 = vmatpush.msra.mxu0 %v631
          %659 = vmatpush.msra.mxu0 %v630
          %660 = vmatmul.f32.gmra.mxu0 %v639
          %v661 = vpop.f32.mrf.mxu0
          %v662 = vadd.f32 0.0, %v661
          %663 = vmatmul.f32.gmra.mxu0 %v642
          %v664 = vpop.f32.mrf.mxu0
          %v665 = vadd.f32 0.0, %v664
          %666 = vdwg.mxu0
          %vm667 = vcmask 261120
          %668 = vst.msk [vmem:[#allocation3] sm:$0xff] %vm667, %v662
          %669 = vst.msk [vmem:[#allocation3 + $0x8] sm:$0xff] %vm667, %v665
        $region84: #{tpu_custom_call.1} parent=75 // pred_fallthru
          _
        %v670 = vld [vmem:[#allocation2] sm:$0x3]
        %v671 = vld [vmem:[%s572] sm:$0x3]
        %v672 = vld [vmem:[%s5] sm:$0xff]
        %v673 = vld [vmem:[%s5 + $0x8] sm:$0xff]
        %v674 = vld [vmem:[%s5 + $0x10] sm:$0xff]
        %v675 = vld [vmem:[%s5 + $0x18] sm:$0xff]
        %vm676 = vcmask 261120
        %v678 = vsel %vm676, %v670, 0
        %680 = vmatpush.msra.mxu0 0.0
        %681 = vmatpush.msra.mxu0 0.0
        %682 = vmatpush.msra.mxu0 0.0
        %683 = vmatpush.msra.mxu0 0.0
        %684 = vmatpush.msra.mxu0 0.0
        %685 = vmatpush.msra.mxu0 0.0
        %686 = vmatpush.msra.mxu0 0.0
        %687 = vmatpush.msra.mxu0 0.0
        %688 = vmatpush.msra.mxu0 0.0
        %689 = vmatpush.msra.mxu0 0.0
        %690 = vmatpush.msra.mxu0 0.0
        %691 = vmatpush.msra.mxu0 0.0
        %692 = vmatpush.msra.mxu0 %v675
        %693 = vmatpush.msra.mxu0 %v674
        %694 = vmatpush.msra.mxu0 %v673
        %695 = vmatpush.msra.mxu0 %v672
        %696 = vmatmul.f32.gmra.mxu0 %v678
        %v697 = vpop.f32.mrf.mxu0
        %v698 = vadd.f32 0.0, %v697
        %699 = vdwg.mxu0
        %v700 = vld [vmem:[%s13] sm:$0x1]
        %v702 = vperm.slane %v700, 0
        %703 = vrot.lane.b32.xlu0 %v702, 32
        %v704 = vpop.permute.xlu0 %703
        %v706 = vadd.f32 %v698, %v704
        %v708 = vrot.slane %v698, 1
        %v709 = vld [vmem:[#allocation3] sm:$0xff]
        %v710 = vld [vmem:[#allocation3 + $0x8] sm:$0xff]
        %v711 = vperm.slane %v698, 0
        %v712 = vperm.slane %v708, 0
        %v715 = vadd.f32 %v711, %v709
        %v716 = vadd.f32 %v712, %v710
        %v717 = vtanh.pop %v715
        %v718 = vtanh.pop %v716
        %v719 = vld [vmem:[%s6] sm:$0x1]
        %v721 = vperm.slane %v719, 0
        %v723 = vmul.f32 %v717, %v721
        %v724 = vmul.f32 %v718, %v721
        %v725 = vsel %vm676, %v723, 0.0
        %726 = vadd.xlane.f32.xlu0 %v725
        %v727 = vpop.xlane.xlu0 %726
        %v728 = vsel %vm676, %v724, 0.0
        %729 = vadd.xlane.f32.xlu0 %v728
        %v730 = vpop.xlane.xlu0 %729
        %v731 = vld [vmem:[%s582] sm:$0xff]
        %v732 = vld [vmem:[%s582 + $0x8] sm:$0xff]
        %v733 = vadd.f32 %v727, %v731
        %v734 = vadd.f32 %v730, %v732
        %vm735 = vcmask 7168
        %v736 = vsel %vm735, %v733, -inf
        %v737 = vrot.slane %v736, 4
        %v738 = vmax.f32 %v736, %v737
        %v739 = vrot.slane %v738, 2
        %v740 = vmax.f32 %v738, %v739
        %v741 = vrot.slane %v740, 1
        %v742 = vmax.f32 %v740, %v741
        %v743 = vsel %vm735, %v734, -inf
        %v744 = vrot.slane %v743, 4
        %v745 = vmax.f32 %v743, %v744
        %v746 = vrot.slane %v745, 2
        %v747 = vmax.f32 %v745, %v746
        %v748 = vrot.slane %v747, 1
        %v749 = vmax.f32 %v747, %v748
        %v750 = vsub.f32 %v733, %v742
        %v751 = vsub.f32 %v734, %v749
        %v752 = vmul.f32 %v750, 1.442695
        %v753 = vpow.pop %v752
        %v754 = vmul.f32 %v751, 1.442695
        %v755 = vpow.pop %v754
        %v756 = vsel %vm735, %v753, 0.0
        %v757 = vrot.slane %v756, 4
        %v758 = vadd.f32 %v756, %v757
        %v759 = vrot.slane %v758, 2
        %v760 = vadd.f32 %v758, %v759
        %v761 = vrot.slane %v760, 1
        %v762 = vadd.f32 %v760, %v761
        %v763 = vsel %vm735, %v755, 0.0
        %v764 = vrot.slane %v763, 4
        %v765 = vadd.f32 %v763, %v764
        %v766 = vrot.slane %v765, 2
        %v767 = vadd.f32 %v765, %v766
        %v768 = vrot.slane %v767, 1
        %v769 = vadd.f32 %v767, %v768
        %v770 = vrcp.pop %v762
        %v771 = vmul.f32 %v762, %v770
        %v772 = vsub.f32 1.0, %v771
        %v773 = vmul.f32 %v770, %v772
        %v774 = vadd.f32 %v770, %v773
        %vm775 = vweird.f32 %v762
        %vm776 = vweird.f32 %v770
        %vm777 = vmor %vm775, %vm776
        %v778 = vsel %vm777, %v770, %v774
        %v779 = vand.u32 2147483647, %v762
        %vm780 = vcmp.eq.f32.partialorder %v779, 8.507059e+37
        %v781 = vand.u32 %v762, 2147483648
        %v782 = vor.u32 1.1754944e-38, %v781
        %v783 = vsel %vm780, %v782, %v778
        %v784 = vmul.f32 %v753, %v783
        %v785 = vrcp.pop %v769
        %v786 = vmul.f32 %v769, %v785
        %v787 = vsub.f32 1.0, %v786
        %v788 = vmul.f32 %v785, %v787
        %v789 = vadd.f32 %v785, %v788
        %vm790 = vweird.f32 %v769
        %vm791 = vweird.f32 %v785
        %vm792 = vmor %vm790, %vm791
        %v793 = vsel %vm792, %v785, %v789
        %v794 = vand.u32 2147483647, %v769
        %vm795 = vcmp.eq.f32.partialorder %v794, 8.507059e+37
        %v796 = vand.u32 %v769, 2147483648
        %v797 = vor.u32 1.1754944e-38, %v796
        %v798 = vsel %vm795, %v797, %v793
        %v799 = vmul.f32 %v755, %v798
        %v800 = vld [vmem:[#allocation4] sm:$0xff]
        %v801 = vld [vmem:[#allocation4 + $0x8] sm:$0xff]
        %803 = vset.pattern.permute.xlu0 0
        %804 = vperm.xlu0 %803, %v784
        %v805 = vpop.permute.xlu0 %804
        %808 = vset.pattern.permute.xlu0 0
        %809 = vperm.xlu0 %808, %v799
        %v810 = vpop.permute.xlu0 %809
        %v812 = vmul.f32 %v805, %v800
        %v813 = vmul.f32 %v810, %v801
        %vm814 = vcmask 523264
        %v815 = vsel %vm814, %v812, 0.0
        %v816 = vrot.slane %v815, 4
        %v817 = vadd.f32 %v815, %v816
        %v818 = vrot.slane %v817, 2
        %v819 = vadd.f32 %v817, %v818
        %v820 = vrot.slane %v819, 1
        %v821 = vadd.f32 %v819, %v820
        %v822 = vsel %vm814, %v813, 0.0
        %v823 = vrot.slane %v822, 4
        %v824 = vadd.f32 %v822, %v823
        %v825 = vrot.slane %v824, 2
        %v826 = vadd.f32 %v824, %v825
        %v827 = vrot.slane %v826, 1
        %v828 = vadd.f32 %v826, %v827
        %v829 = vld [vmem:[%s9] sm:$0xff]
        %v830 = vld [vmem:[%s9 + $0x8] sm:$0xff]
        %v831 = vld [vmem:[%s9 + $0x10] sm:$0xff]
        %v832 = vld [vmem:[%s9 + $0x18] sm:$0xff]
        %v834 = vsel %vm676, %v671, 0
        %836 = vmatpush.msra.mxu0 0.0
        %837 = vmatpush.msra.mxu0 0.0
        %838 = vmatpush.msra.mxu0 0.0
        %839 = vmatpush.msra.mxu0 0.0
        %840 = vmatpush.msra.mxu0 0.0
        %841 = vmatpush.msra.mxu0 0.0
        %842 = vmatpush.msra.mxu0 0.0
        %843 = vmatpush.msra.mxu0 0.0
        %844 = vmatpush.msra.mxu0 0.0
        %845 = vmatpush.msra.mxu0 0.0
        %846 = vmatpush.msra.mxu0 0.0
        %847 = vmatpush.msra.mxu0 0.0
        %848 = vmatpush.msra.mxu0 %v832
        %849 = vmatpush.msra.mxu0 %v831
        %850 = vmatpush.msra.mxu0 %v830
        %851 = vmatpush.msra.mxu0 %v829
        %852 = vmatmul.f32.gmra.mxu0 %v834
        %v853 = vpop.f32.mrf.mxu0
        %v854 = vadd.f32 0.0, %v853
        %855 = vdwg.mxu0
        %v856 = vld [vmem:[%s10] sm:$0xff]
        %v857 = vld [vmem:[%s10 + $0x8] sm:$0xff]
        %v858 = vld [vmem:[%s10 + $0x10] sm:$0xff]
        %v859 = vld [vmem:[%s10 + $0x18] sm:$0xff]
        %v860 = vld [vmem:[%s10 + $0x20] sm:$0xff]
        %v861 = vld [vmem:[%s10 + $0x28] sm:$0xff]
        %v862 = vld [vmem:[%s10 + $0x30] sm:$0xff]
        %v863 = vld [vmem:[%s10 + $0x38] sm:$0xff]
        %vm866 = vcmask 1041409
        %v867 = vsel %vm866, %v828, %v821
        %v868 = vsel %vm814, %v867, 0
        %870 = vmatpush.msra.mxu0 0.0
        %871 = vmatpush.msra.mxu0 0.0
        %872 = vmatpush.msra.mxu0 0.0
        %873 = vmatpush.msra.mxu0 0.0
        %874 = vmatpush.msra.mxu0 0.0
        %875 = vmatpush.msra.mxu0 0.0
        %876 = vmatpush.msra.mxu0 0.0
        %877 = vmatpush.msra.mxu0 0.0
        %878 = vmatpush.msra.mxu0 %v863
        %879 = vmatpush.msra.mxu0 %v862
        %880 = vmatpush.msra.mxu0 %v861
        %881 = vmatpush.msra.mxu0 %v860
        %882 = vmatpush.msra.mxu0 %v859
        %883 = vmatpush.msra.mxu0 %v858
        %884 = vmatpush.msra.mxu0 %v857
        %885 = vmatpush.msra.mxu0 %v856
        %886 = vmatmul.f32.gmra.mxu0 %v868
        %v887 = vpop.f32.mrf.mxu0
        %v888 = vadd.f32 0.0, %v887
        %889 = vdwg.mxu0
        %v890 = vadd.f32 %v854, %v888
        %v891 = vld [vmem:[%s12] sm:$0x1]
        %v893 = vperm.slane %v891, 0
        %v895 = vadd.f32 %v890, %v893
        %897 = vrot.lane.b32.xlu0 %v706, 96
        %v898 = vpop.permute.xlu0 %897
        %v900 = vadd.f32 %v895, %v898
        %v901 = vxor.u32 %v900, 2147483648
        %v902 = vmul.f32 %v901, 1.442695
        %v903 = vpow.pop %v902
        %v904 = vadd.f32 %v903, 1.0
        %v905 = vrcp.pop %v904
        %v906 = vmul.f32 %v904, %v905
        %v907 = vsub.f32 1.0, %v906
        %v908 = vmul.f32 %v905, %v907
        %v909 = vadd.f32 %v905, %v908
        %vm910 = vweird.f32 %v904
        %vm911 = vweird.f32 %v905
        %vm912 = vmor %vm910, %vm911
        %v913 = vsel %vm912, %v905, %v909
        %v914 = vand.u32 2147483647, %v904
        %vm915 = vcmp.eq.f32.partialorder %v914, 8.507059e+37
        %v916 = vand.u32 %v904, 2147483648
        %v917 = vor.u32 1.1754944e-38, %v916
        %v918 = vsel %vm915, %v917, %v913
        %v919 = vmul.f32 1.0, %v918
        %920 = vrot.lane.b32.xlu0 %v706, 32
        %v921 = vpop.permute.xlu0 %920
        %v923 = vmul.f32 %v919, %v921
        %925 = vrot.lane.b32.xlu0 %v923, 64
        %v926 = vpop.permute.xlu0 %925
        %v928 = vadd.f32 %v895, %v926
        %v929 = vtanh.pop %v928
        %v930 = vsub.f32 1.0, %v919
        %932 = vrot.lane.b32.xlu0 %v929, 96
        %v933 = vpop.permute.xlu0 %932
        %v935 = vmul.f32 %v930, %v933
        %936 = vrot.lane.b32.xlu0 %v670, 32
        %v937 = vpop.permute.xlu0 %936
        %v939 = vmul.f32 %v919, %v937
        %v940 = vadd.f32 %v935, %v939
        %v941 = vld [vmem:[%s11] sm:$0xff]
        %v942 = vld [vmem:[%s11 + $0x8] sm:$0xff]
        %v943 = vld [vmem:[%s11 + $0x10] sm:$0xff]
        %v944 = vld [vmem:[%s11 + $0x18] sm:$0xff]
        %946 = vrot.lane.b32.xlu0 %v940, 96
        %v947 = vpop.permute.xlu0 %946
        %v948 = vsel %vm676, %v947, 0
        %950 = vmatpush.msra.mxu0 0.0
        %951 = vmatpush.msra.mxu0 0.0
        %952 = vmatpush.msra.mxu0 0.0
        %953 = vmatpush.msra.mxu0 0.0
        %954 = vmatpush.msra.mxu0 0.0
        %955 = vmatpush.msra.mxu0 0.0
        %956 = vmatpush.msra.mxu0 0.0
        %957 = vmatpush.msra.mxu0 0.0
        %958 = vmatpush.msra.mxu0 0.0
        %959 = vmatpush.msra.mxu0 0.0
        %960 = vmatpush.msra.mxu0 0.0
        %961 = vmatpush.msra.mxu0 0.0
        %962 = vmatpush.msra.mxu0 %v944
        %963 = vmatpush.msra.mxu0 %v943
        %964 = vmatpush.msra.mxu0 %v942
        %965 = vmatpush.msra.mxu0 %v941
        %966 = vmatmul.f32.gmra.mxu0 %v948
        %v967 = vpop.f32.mrf.mxu0
        %v968 = vadd.f32 0.0, %v967
        %969 = vdwg.mxu0
        %971 = vrot.lane.b32.xlu0 %v968, 96
        %v972 = vpop.permute.xlu0 %971
        %v974 = vadd.f32 %v890, %v972
        %vm976 = vcmask 254976
        %977 = vst.msk [vmem:[#allocation2] sm:$0x3] %vm976, %v947
        %979 = vrot.lane.b32.xlu0 %v974, 64
        %v980 = vpop.permute.xlu0 %979
        %v982 = vsel %vm676, %v947, %v980
        %vm983 = vcmask 517120
        %984 = vst.msk [vmem:[%s563] sm:$0x3] %vm983, %v982
        %p985 = scmp.eq.s32.totalorder %s37, 7
        // Predicated region
        $region85: #{tpu_custom_call.1} parent=75 // pred_check
          %p986 = pneg %p985
        $region86: #{tpu_custom_call.1} parent=75 // pred_check_branch
          %988 = sbr.rel (%p986) target = $region88
        $region87: #{tpu_custom_call.1} parent=75 // pred_region
          %989 = vst.msk [vmem:[#allocation8] sm:$0x3] %vm976, %v947
        $region88: #{tpu_custom_call.1} parent=75 // pred_fallthru
          _
        %s990 = sand.u32 %s370, 1
        %s991 = scalar_lea.sflag [#allocation6], %s990
        %s992 = sand.u32 %s370, 1
        %s993 = smul.addr %s992, 2
        %s994 = scalar_lea.vmem [#allocation7], %s993
        // Predicated region
        $region89: #{tpu_custom_call.1} parent=75 // pred_check
          %p995 = pneg %p380
        $region90: #{tpu_custom_call.1} parent=75 // pred_check_branch
          %997 = sbr.rel (%p995) target = $region92
        $region91: #{tpu_custom_call.1} parent=75 // pred_region
          %999 = vsyncadd %s991, 0
          %s1000 = sadd.s32 %s36, %s37
          %s1001 = smul.addr %s1000, 2
          %s1002 = scalar_lea.hbm %s14, %s1001
          %s1004 = sshll.u32 %s994, 4
          %s1005 = int_to_ptr.vmem [resolvable:$true] %s1004
          %s1006 = sshll.u32 %s1002, 4
          %s1007 = int_to_ptr.hbm [resolvable:$true] %s1006
          %1009 = dma.vmem_to_hbm [thread:$0]  %s1005, 32, %s1007, %s991
        $region92: #{tpu_custom_call.1} parent=75 // pred_fallthru
          _
        // Predicated region
        $region93: #{tpu_custom_call.1} parent=75 // pred_check
          %p1010 = pneg %p406
        $region94: #{tpu_custom_call.1} parent=75 // pred_check_branch
          %1012 = sbr.rel (%p1010) target = $region96
        $region95: #{tpu_custom_call.1} parent=75 // pred_region
          %1014 = vsyncadd [#allocation9], 0
          %s1015 = smul.addr %s36, 2
          %s1016 = scalar_lea.hbm %s15, %s1015
          %s1018 = sshll.u32 [#allocation8], 4
          %s1019 = int_to_ptr.vmem [resolvable:$true] %s1018
          %s1020 = sshll.u32 %s1016, 4
          %s1021 = int_to_ptr.hbm [resolvable:$true] %s1020
          %1023 = dma.vmem_to_hbm [thread:$0]  %s1019, 32, %s1021, [#allocation9]
        $region96: #{tpu_custom_call.1} parent=75 // pred_fallthru
          _
        // Predicated region
        $region97: #{tpu_custom_call.1} parent=75 // pred_check
          %p1024 = pneg %p406
        $region98: #{tpu_custom_call.1} parent=75 // pred_check_branch
          %1026 = sbr.rel (%p1024) target = $region100
        $region99: #{tpu_custom_call.1} parent=75 // pred_region
          %1028 = dma.done [#allocation9], 32
        $region100: #{tpu_custom_call.1} parent=75 // pred_fallthru
          _
      $region76: #{tpu_custom_call.1} parent=5 // pred_fallthru
        _
      %p1029 = scmp.le.s32.totalorder 2, %s27
      // Predicated region
      $region101: #{tpu_custom_call.1} parent=5 // pred_check
        %p1030 = pneg %p1029
      $region102: #{tpu_custom_call.1} parent=5 // pred_check_branch
        %1032 = sbr.rel (%p1030) target = $region104
      $region103: #{tpu_custom_call.1} parent=5 // pred_region
        %s1033 = ssub.s32 %s27, 2
        // Predicated region
        $region105: #{tpu_custom_call.1} parent=103 // pred_check
          %p1034 = pneg %p386
        $region106: #{tpu_custom_call.1} parent=103 // pred_check_branch
          %1036 = sbr.rel (%p1034) target = $region108
        $region107: #{tpu_custom_call.1} parent=103 // pred_region
          %s1037 = sand.u32 %s371, 1
          %s1038 = scalar_lea.sflag [#allocation6], %s1037
          %s1039 = sand.u32 %s371, 1
          %s1040 = smul.addr %s1039, 2
          %s1041 = scalar_lea.vmem [#allocation7], %s1040
          %1043 = dma.done %s1038, 32
        $region108: #{tpu_custom_call.1} parent=103 // pred_fallthru
          _
      $region104: #{tpu_custom_call.1} parent=5 // pred_fallthru
        _
    $region6: #{tpu_custom_call.1} parent=1 // loop_footer
      %s31 = sadd.s32 1, %s27
    $region7: #{tpu_custom_call.1} parent=1 // loop_footer_branch
      %26 = sbr.rel target = $region3
    $region8: #{tpu_custom_call.1} parent=1 // loop_exit
      _
    %1044 = vsyncpa [#allocation5], 1
    %s1045 = scalar_lea.sflag [#allocation5], 1
    %1046 = vsyncpa %s1045, 1
    %1047 = vsyncpa [#allocation6], 1
    %s1048 = scalar_lea.sflag [#allocation6], 1
    %1049 = vsyncpa %s1048, 1
    %1050 = vsyncpa [#allocation9], 1

</llo_original>
